<compile_context>
chip_gen: v5e
topology: v5e:2x2
jax: 0.10.0
libtpu: 0.0.40
codegen_flags: <defaults>
</compile_context>

<pallas_src>
import jax
import jax.numpy as jnp
from jax.experimental import pallas as pl
from jax.experimental.pallas import tpu as pltpu


# ----------------------------- kernel ---------------------------------------

def _make_kernel(n_hop: int, hid: int):
    H = hid

    def kernel(x_ref, adjt_ref, w0_ref, b0_ref, w_ih_ref, w_hh_ref,
               b_lstm_ref, w_gin_ref, b_gin_ref, a0_ref, out_ref):
        adjt = adjt_ref[...]                       # (adj + I)^T, [N, N]

        def lstm_cell(k, inp, h, c):
            # Feature-major fused LSTMCell; gate rows host-permuted to i|f|o|g.
            # gates = W_ih^T @ inp + W_hh^T @ h + b        -> [4H, N]
            gates = jnp.dot(w_ih_ref[k], inp, preferred_element_type=jnp.float32)
            gates = gates + jnp.dot(w_hh_ref[k], h,
                                    preferred_element_type=jnp.float32)
            gates = gates + b_lstm_ref[k]                  # [4H, 1] lane-bcast
            sig = jax.nn.sigmoid(gates[0:3 * H, :])        # i | f | o
            g = jnp.tanh(gates[3 * H:4 * H, :])            # g
            c_new = sig[H:2 * H, :] * c + sig[0:H, :] * g
            h_new = sig[2 * H:3 * H, :] * jnp.tanh(c_new)
            return h_new, c_new

        # Cell 0 (zero initial state): input Linear folded into W_ih[0]
        # host-side; dead f-gate rows dropped.  Row order i|o|g.
        gates0 = jnp.dot(w0_ref[...], x_ref[...],
                         preferred_element_type=jnp.float32) + b0_ref[...]
        sig0 = jax.nn.sigmoid(gates0[0:2 * H, :])          # i | o
        g0 = jnp.tanh(gates0[2 * H:3 * H, :])
        c = sig0[0:H, :] * g0
        h = sig0[H:2 * H, :] * jnp.tanh(c)

        a0 = a0_ref[...]                                   # [H, 1]

        # Online softmax over hops: carry running max, denom and the
        # weighted-sum accumulator only (no per-hop aggregation list).
        m_run = None
        denom = None
        acc = None
        for i in range(n_hop):
            # GINLayer (eps=0), feature-major: relu(W_gin^T @ ((adj+I) @ h) + b)
            m = jnp.dot(h, adjt, preferred_element_type=jnp.float32)   # [H, N]
            h_gnn = jnp.maximum(
                jnp.dot(w_gin_ref[i], m, preferred_element_type=jnp.float32)
                + b_gin_ref[i], 0.0)
            h, c = lstm_cell(i, h_gnn, h, c)

            # Attention score for this hop.  The h0 @ a[H:] term is constant
            # across hops so it cancels in the hop softmax -> dropped exactly.
            s = jnp.sum(h * a0, axis=0, keepdims=True)                 # [1, N]
            if i == 0:
                m_run = s
                denom = jnp.ones_like(s)
                acc = h
            else:
                m_new = jnp.maximum(m_run, s)
                scale = jnp.exp(m_run - m_new)
                e = jnp.exp(s - m_new)
                denom = denom * scale + e
                acc = acc * scale + e * h
                m_run = m_new

        inv = pl.reciprocal(denom, approx=True)                        # [1, N]
        out_ref[...] = acc * inv                                       # [H, N]

    return kernel


# ----------------------------- wrapper ---------------------------------------

def _full_spec(arr):
    nd = arr.ndim
    return pl.BlockSpec(arr.shape, lambda i, _nd=nd: (0,) * _nd)


def mixhop_forward(x, adj, params, *, n_hop, hid):
    N = x.shape[0]
    H = hid

    # ---- host-side layout & algebraic prep (no extra device passes in-kernel)
    # Gate-column permutations of the PyTorch (i, f, g, o) order.
    idx_i = jnp.arange(0, H)
    idx_f = jnp.arange(H, 2 * H)
    idx_g = jnp.arange(2 * H, 3 * H)
    idx_o = jnp.arange(3 * H, 4 * H)
    cols_ifog = jnp.concatenate([idx_i, idx_f, idx_o, idx_g])   # kernel order i|f|o|g
    cols_iog = jnp.concatenate([idx_i, idx_o, idx_g])           # cell-0 order i|o|g

    # Cell 0: fold the input Linear into W_ih[0]; drop dead f-gate rows.
    w_ih0 = params["w_ih"][0]                                   # [H, 4H]
    w_fold = params["w_lin"] @ w_ih0                            # [IN, 4H]
    b_fold = params["b_lin"] @ w_ih0 + params["b_lstm"][0][None, :]   # [1, 4H]
    w0_t = w_fold[:, cols_iog].T                                # [3H, IN]
    b0_t = b_fold[:, cols_iog].T                                # [3H, 1]

    # Cells 1..n_hop: transpose to feature-major, permute gate rows.
    w_ih_t = jnp.transpose(params["w_ih"][1:][:, :, cols_ifog], (0, 2, 1))   # [n_hop,4H,H]
    w_hh_t = jnp.transpose(params["w_hh"][1:][:, :, cols_ifog], (0, 2, 1))   # [n_hop,4H,H]
    b_lstm_t = params["b_lstm"][1:][:, cols_ifog][:, :, None]                # [n_hop,4H,1]

    w_gin_t = jnp.transpose(params["w_gin"], (0, 2, 1))          # [n_hop, H, H]
    b_gin_t = params["b_gin"][:, :, None]                        # [n_hop, H, 1]
    a0_col = params["a"][0].reshape(H, 1)                        # [H, 1]

    x_t = x.T                                                    # [IN, N]
    adjt = (adj + jnp.eye(N, dtype=adj.dtype)).T                 # (adj + I)^T

    kernel = _make_kernel(n_hop, hid)
    args = (x_t, adjt, w0_t, b0_t, w_ih_t, w_hh_t, b_lstm_t,
            w_gin_t, b_gin_t, a0_col)
    out_t = pl.pallas_call(
        kernel,
        out_shape=jax.ShapeDtypeStruct((hid, N), jnp.float32),
        grid=(1,),
        in_specs=[_full_spec(a) for a in args],
        out_specs=pl.BlockSpec((hid, N), lambda i: (0, 0)),
        compiler_params=pltpu.CompilerParams(
            dimension_semantics=("arbitrary",)),
    )(*args)
    return out_t.T                                               # back to [N, hid]


# ------------------------- pure-JAX reference --------------------------------

def reference_forward(x, adj, p, *, n_hop, hid):
    def lstm(k, inp, h, c):
        g = inp @ p["w_ih"][k] + h @ p["w_hh"][k] + p["b_lstm"][k]
        i = jax.nn.sigmoid(g[:, :hid])
        f = jax.nn.sigmoid(g[:, hid:2 * hid])
        gg = jnp.tanh(g[:, 2 * hid:3 * hid])
        o = jax.nn.sigmoid(g[:, 3 * hid:])
        c2 = f * c + i * gg
        return o * jnp.tanh(c2), c2

    lin = x @ p["w_lin"] + p["b_lin"]
    z = jnp.zeros_like(lin)
    h, c = lstm(0, lin, z, z)
    h0 = h
    aggs = []
    for i in range(n_hop):
        m = adj @ h + h
        hg = jnp.maximum(m @ p["w_gin"][i] + p["b_gin"][i], 0.0)
        h, c = lstm(i + 1, hg, h, c)
        aggs.append(h)
    a0, a1 = p["a"][0], p["a"][1]
    scores = jnp.stack([aggs[i] @ a0 + h0 @ a1 for i in range(n_hop)], axis=1)
    att = jax.nn.softmax(scores, axis=1)
    out = att[:, 0:1] * aggs[0]
    for i in range(1, n_hop):
        out = out + att[:, i:i + 1] * aggs[i]
    return out


# ----------------------------- main ------------------------------------------

if __name__ == "__main__":
    N, IN_FEATS, HID, N_HOP = 128, 16, 32, 3

    key = jax.random.PRNGKey(0)
    ks = jax.random.split(key, 12)

    def rnd(k, shape, scale):
        return jax.random.normal(k, shape, jnp.float32) * scale

    lstm_scale = 1.0 / jnp.sqrt(jnp.float32(HID))
    xavier_std = 1.414 * jnp.sqrt(2.0 / (2 * HID + 1))  # nn.init.xavier_normal_(a, gain=1.414)

    params = {
        # nn.Linear(in_feats, hid): weight [hid, in] -> stored transposed [in, hid]
        "w_lin": rnd(ks[0], (IN_FEATS, HID), 1.0 / jnp.sqrt(jnp.float32(IN_FEATS))),
        "b_lin": rnd(ks[1], (1, HID), 0.1),
        # (n_hop+1) LSTMCell(hid, hid): W_ih/W_hh [4H, H] -> stored transposed [H, 4H]
        "w_ih": rnd(ks[2], (N_HOP + 1, HID, 4 * HID), lstm_scale),
        "w_hh": rnd(ks[3], (N_HOP + 1, HID, 4 * HID), lstm_scale),
        # b_ih + b_hh combined (they are always summed)
        "b_lstm": rnd(ks[4], (N_HOP + 1, 4 * HID), lstm_scale),
        # n_hop GIN linear layers (hid -> hid), stored transposed
        "w_gin": rnd(ks[5], (N_HOP, HID, HID), lstm_scale),
        "b_gin": rnd(ks[6], (N_HOP, HID), 0.1),
        # attention vector a [2H, 1] -> stored as [2, H] (a[:H], a[H:])
        "a": (jax.random.normal(ks[7], (2 * HID, 1), jnp.float32)
              * xavier_std).reshape(2, HID),
    }

    x = jax.random.normal(ks[8], (N, IN_FEATS), jnp.float32)
    adj = (jax.random.uniform(ks[9], (N, N)) < 0.1).astype(jnp.float32)

    out = mixhop_forward(x, adj, params, n_hop=N_HOP, hid=HID)
    out = jax.block_until_ready(out)

    ref = reference_forward(x, adj, params, n_hop=N_HOP, hid=HID)
    assert out.shape == (N, HID)
    assert jnp.all(jnp.isfinite(out))
    assert jnp.allclose(out, ref, rtol=1e-3, atol=1e-3), (
        f"max abs diff {jnp.max(jnp.abs(out - ref))}")

    print("KERNEL_OK")
</pallas_src>

<mosaic_0001>
module attributes {stable_mosaic.version = 11 : i64} {
  func.func @kernel(%arg0: i32, %arg1: memref<16x128xf32, #tpu.memory_space<vmem>>, %arg2: memref<128x128xf32, #tpu.memory_space<vmem>>, %arg3: memref<96x16xf32, #tpu.memory_space<vmem>>, %arg4: memref<96x1xf32, #tpu.memory_space<vmem>>, %arg5: memref<3x128x32xf32, #tpu.memory_space<vmem>>, %arg6: memref<3x128x32xf32, #tpu.memory_space<vmem>>, %arg7: memref<3x128x1xf32, #tpu.memory_space<vmem>>, %arg8: memref<3x32x32xf32, #tpu.memory_space<vmem>>, %arg9: memref<3x32x1xf32, #tpu.memory_space<vmem>>, %arg10: memref<32x1xf32, #tpu.memory_space<vmem>>, %arg11: memref<32x128xf32, #tpu.memory_space<vmem>>) attributes {dimension_semantics = [#tpu.dimension_semantics<arbitrary>], iteration_bounds = array<i64: 1>, scalar_prefetch = 0 : i64, scratch_operands = 0 : i64, tpu.core_type = #tpu.core_type<tc>, window_params = [{pipeline_mode = #tpu.pipeline_mode<synchronous>, transform_indices = @transform_0, window_bounds = array<i64: 16, 128>}, {pipeline_mode = #tpu.pipeline_mode<synchronous>, transform_indices = @transform_1, window_bounds = array<i64: 128, 128>}, {pipeline_mode = #tpu.pipeline_mode<synchronous>, transform_indices = @transform_2, window_bounds = array<i64: 96, 16>}, {pipeline_mode = #tpu.pipeline_mode<synchronous>, transform_indices = @transform_3, window_bounds = array<i64: 96, 1>}, {pipeline_mode = #tpu.pipeline_mode<synchronous>, transform_indices = @transform_4, window_bounds = array<i64: 3, 128, 32>}, {pipeline_mode = #tpu.pipeline_mode<synchronous>, transform_indices = @transform_5, window_bounds = array<i64: 3, 128, 32>}, {pipeline_mode = #tpu.pipeline_mode<synchronous>, transform_indices = @transform_6, window_bounds = array<i64: 3, 128, 1>}, {pipeline_mode = #tpu.pipeline_mode<synchronous>, transform_indices = @transform_7, window_bounds = array<i64: 3, 32, 32>}, {pipeline_mode = #tpu.pipeline_mode<synchronous>, transform_indices = @transform_8, window_bounds = array<i64: 3, 32, 1>}, {pipeline_mode = #tpu.pipeline_mode<synchronous>, transform_indices = @transform_9, window_bounds = array<i64: 32, 1>}, {pipeline_mode = #tpu.pipeline_mode<synchronous>, transform_indices = @transform_10, window_bounds = array<i64: 32, 128>}]} {
    %c0 = arith.constant 0 : index
    %c0_0 = arith.constant 0 : index
    %0 = vector.load %arg2[%c0, %c0_0] : memref<128x128xf32, #tpu.memory_space<vmem>>, vector<128x128xf32>
    %c0_1 = arith.constant 0 : index
    %c0_2 = arith.constant 0 : index
    %1 = vector.load %arg3[%c0_1, %c0_2] : memref<96x16xf32, #tpu.memory_space<vmem>>, vector<96x16xf32>
    %c0_3 = arith.constant 0 : index
    %c0_4 = arith.constant 0 : index
    %2 = vector.load %arg1[%c0_3, %c0_4] : memref<16x128xf32, #tpu.memory_space<vmem>>, vector<16x128xf32>
    %cst = arith.constant dense<0.000000e+00> : vector<96x128xf32>
    %3 = tpu.matmul %1, %2, %cst {dimension_numbers = #tpu.dot_dimension_numbers<[1], [0], [0], [1], [0, 0, 1, 1], [], []>} : vector<96x16xf32>, vector<16x128xf32>, vector<96x128xf32> -> vector<96x128xf32>
    %c0_5 = arith.constant 0 : index
    %c0_6 = arith.constant 0 : index
    %4 = vector.load %arg4[%c0_5, %c0_6] : memref<96x1xf32, #tpu.memory_space<vmem>>, vector<96x1xf32>
    %5 = vector.broadcast %4 : vector<96x1xf32> to vector<96x128xf32>
    %6 = arith.addf %3, %5 : vector<96x128xf32>
    %7 = vector.extract_strided_slice %6 {offsets = [0, 0], sizes = [64, 128], strides = [1, 1]} : vector<96x128xf32> to vector<64x128xf32>
    %8 = arith.negf %7 : vector<64x128xf32>
    %9 = math.exp %8 : vector<64x128xf32>
    %cst_7 = arith.constant 1.000000e+00 : f32
    %10 = vector.broadcast %cst_7 : f32 to vector<64x128xf32>
    %11 = arith.addf %10, %9 : vector<64x128xf32>
    %12 = arith.divf %10, %11 : vector<64x128xf32>
    %13 = vector.extract_strided_slice %6 {offsets = [64, 0], sizes = [32, 128], strides = [1, 1]} : vector<96x128xf32> to vector<32x128xf32>
    %14 = math.tanh %13 : vector<32x128xf32>
    %15 = vector.extract_strided_slice %12 {offsets = [0, 0], sizes = [32, 128], strides = [1, 1]} : vector<64x128xf32> to vector<32x128xf32>
    %16 = arith.mulf %15, %14 : vector<32x128xf32>
    %17 = vector.extract_strided_slice %12 {offsets = [32, 0], sizes = [32, 128], strides = [1, 1]} : vector<64x128xf32> to vector<32x128xf32>
    %18 = math.tanh %16 : vector<32x128xf32>
    %19 = arith.mulf %17, %18 : vector<32x128xf32>
    %c0_8 = arith.constant 0 : index
    %c0_9 = arith.constant 0 : index
    %20 = vector.load %arg10[%c0_8, %c0_9] : memref<32x1xf32, #tpu.memory_space<vmem>>, vector<32x1xf32>
    %cst_10 = arith.constant dense<0.000000e+00> : vector<32x128xf32>
    %21 = tpu.matmul %19, %0, %cst_10 {dimension_numbers = #tpu.dot_dimension_numbers<[1], [0], [0], [1], [0, 0, 1, 1], [], []>} : vector<32x128xf32>, vector<128x128xf32>, vector<32x128xf32> -> vector<32x128xf32>
    %c0_11 = arith.constant 0 : index
    %c0_12 = arith.constant 0 : index
    %c0_13 = arith.constant 0 : index
    %22 = vector.load %arg8[%c0_11, %c0_12, %c0_13] : memref<3x32x32xf32, #tpu.memory_space<vmem>>, vector<1x32x32xf32>
    %23 = vector.shape_cast %22 : vector<1x32x32xf32> to vector<32x32xf32>
    %cst_14 = arith.constant dense<0.000000e+00> : vector<32x128xf32>
    %24 = tpu.matmul %23, %21, %cst_14 {dimension_numbers = #tpu.dot_dimension_numbers<[1], [0], [0], [1], [0, 0, 1, 1], [], []>} : vector<32x32xf32>, vector<32x128xf32>, vector<32x128xf32> -> vector<32x128xf32>
    %c0_15 = arith.constant 0 : index
    %c0_16 = arith.constant 0 : index
    %c0_17 = arith.constant 0 : index
    %25 = vector.load %arg9[%c0_15, %c0_16, %c0_17] : memref<3x32x1xf32, #tpu.memory_space<vmem>>, vector<1x32x1xf32>
    %26 = vector.shape_cast %25 : vector<1x32x1xf32> to vector<32x1xf32>
    %27 = vector.broadcast %26 : vector<32x1xf32> to vector<32x128xf32>
    %28 = arith.addf %24, %27 : vector<32x128xf32>
    %cst_18 = arith.constant 0.000000e+00 : f32
    %29 = vector.broadcast %cst_18 : f32 to vector<32x128xf32>
    %30 = arith.maximumf %28, %29 : vector<32x128xf32>
    %c0_19 = arith.constant 0 : index
    %c0_20 = arith.constant 0 : index
    %c0_21 = arith.constant 0 : index
    %31 = vector.load %arg5[%c0_19, %c0_20, %c0_21] : memref<3x128x32xf32, #tpu.memory_space<vmem>>, vector<1x128x32xf32>
    %32 = vector.shape_cast %31 : vector<1x128x32xf32> to vector<128x32xf32>
    %cst_22 = arith.constant dense<0.000000e+00> : vector<128x128xf32>
    %33 = tpu.matmul %32, %30, %cst_22 {dimension_numbers = #tpu.dot_dimension_numbers<[1], [0], [0], [1], [0, 0, 1, 1], [], []>} : vector<128x32xf32>, vector<32x128xf32>, vector<128x128xf32> -> vector<128x128xf32>
    %c0_23 = arith.constant 0 : index
    %c0_24 = arith.constant 0 : index
    %c0_25 = arith.constant 0 : index
    %34 = vector.load %arg6[%c0_23, %c0_24, %c0_25] : memref<3x128x32xf32, #tpu.memory_space<vmem>>, vector<1x128x32xf32>
    %35 = vector.shape_cast %34 : vector<1x128x32xf32> to vector<128x32xf32>
    %cst_26 = arith.constant dense<0.000000e+00> : vector<128x128xf32>
    %36 = tpu.matmul %35, %19, %cst_26 {dimension_numbers = #tpu.dot_dimension_numbers<[1], [0], [0], [1], [0, 0, 1, 1], [], []>} : vector<128x32xf32>, vector<32x128xf32>, vector<128x128xf32> -> vector<128x128xf32>
    %37 = arith.addf %33, %36 : vector<128x128xf32>
    %c0_27 = arith.constant 0 : index
    %c0_28 = arith.constant 0 : index
    %c0_29 = arith.constant 0 : index
    %38 = vector.load %arg7[%c0_27, %c0_28, %c0_29] : memref<3x128x1xf32, #tpu.memory_space<vmem>>, vector<1x128x1xf32>
    %39 = vector.shape_cast %38 : vector<1x128x1xf32> to vector<128x1xf32>
    %40 = vector.broadcast %39 : vector<128x1xf32> to vector<128x128xf32>
    %41 = arith.addf %37, %40 : vector<128x128xf32>
    %42 = vector.extract_strided_slice %41 {offsets = [0, 0], sizes = [96, 128], strides = [1, 1]} : vector<128x128xf32> to vector<96x128xf32>
    %43 = arith.negf %42 : vector<96x128xf32>
    %44 = math.exp %43 : vector<96x128xf32>
    %cst_30 = arith.constant 1.000000e+00 : f32
    %45 = vector.broadcast %cst_30 : f32 to vector<96x128xf32>
    %46 = arith.addf %45, %44 : vector<96x128xf32>
    %47 = arith.divf %45, %46 : vector<96x128xf32>
    %48 = vector.extract_strided_slice %41 {offsets = [96, 0], sizes = [32, 128], strides = [1, 1]} : vector<128x128xf32> to vector<32x128xf32>
    %49 = math.tanh %48 : vector<32x128xf32>
    %50 = vector.extract_strided_slice %47 {offsets = [32, 0], sizes = [32, 128], strides = [1, 1]} : vector<96x128xf32> to vector<32x128xf32>
    %51 = arith.mulf %50, %16 : vector<32x128xf32>
    %52 = vector.extract_strided_slice %47 {offsets = [0, 0], sizes = [32, 128], strides = [1, 1]} : vector<96x128xf32> to vector<32x128xf32>
    %53 = arith.mulf %52, %49 : vector<32x128xf32>
    %54 = arith.addf %51, %53 : vector<32x128xf32>
    %55 = vector.extract_strided_slice %47 {offsets = [64, 0], sizes = [32, 128], strides = [1, 1]} : vector<96x128xf32> to vector<32x128xf32>
    %56 = math.tanh %54 : vector<32x128xf32>
    %57 = arith.mulf %55, %56 : vector<32x128xf32>
    %58 = vector.broadcast %20 : vector<32x1xf32> to vector<32x128xf32>
    %59 = arith.mulf %57, %58 : vector<32x128xf32>
    %cst_31 = arith.constant dense<0.000000e+00> : vector<128xf32>
    %60 = vector.multi_reduction <add>, %59, %cst_31 [0] : vector<32x128xf32> to vector<128xf32>
    %61 = vector.shape_cast %60 : vector<128xf32> to vector<1x128xf32>
    %cst_32 = arith.constant 1.000000e+00 : f32
    %62 = vector.broadcast %cst_32 : f32 to vector<1x128xf32>
    %cst_33 = arith.constant dense<0.000000e+00> : vector<32x128xf32>
    %63 = tpu.matmul %57, %0, %cst_33 {dimension_numbers = #tpu.dot_dimension_numbers<[1], [0], [0], [1], [0, 0, 1, 1], [], []>} : vector<32x128xf32>, vector<128x128xf32>, vector<32x128xf32> -> vector<32x128xf32>
    %c1 = arith.constant 1 : index
    %c0_34 = arith.constant 0 : index
    %c0_35 = arith.constant 0 : index
    %64 = vector.load %arg8[%c1, %c0_34, %c0_35] : memref<3x32x32xf32, #tpu.memory_space<vmem>>, vector<1x32x32xf32>
    %65 = vector.shape_cast %64 : vector<1x32x32xf32> to vector<32x32xf32>
    %cst_36 = arith.constant dense<0.000000e+00> : vector<32x128xf32>
    %66 = tpu.matmul %65, %63, %cst_36 {dimension_numbers = #tpu.dot_dimension_numbers<[1], [0], [0], [1], [0, 0, 1, 1], [], []>} : vector<32x32xf32>, vector<32x128xf32>, vector<32x128xf32> -> vector<32x128xf32>
    %c1_37 = arith.constant 1 : index
    %c0_38 = arith.constant 0 : index
    %c0_39 = arith.constant 0 : index
    %67 = vector.load %arg9[%c1_37, %c0_38, %c0_39] : memref<3x32x1xf32, #tpu.memory_space<vmem>>, vector<1x32x1xf32>
    %68 = vector.shape_cast %67 : vector<1x32x1xf32> to vector<32x1xf32>
    %69 = vector.broadcast %68 : vector<32x1xf32> to vector<32x128xf32>
    %70 = arith.addf %66, %69 : vector<32x128xf32>
    %cst_40 = arith.constant 0.000000e+00 : f32
    %71 = vector.broadcast %cst_40 : f32 to vector<32x128xf32>
    %72 = arith.maximumf %70, %71 : vector<32x128xf32>
    %c1_41 = arith.constant 1 : index
    %c0_42 = arith.constant 0 : index
    %c0_43 = arith.constant 0 : index
    %73 = vector.load %arg5[%c1_41, %c0_42, %c0_43] : memref<3x128x32xf32, #tpu.memory_space<vmem>>, vector<1x128x32xf32>
    %74 = vector.shape_cast %73 : vector<1x128x32xf32> to vector<128x32xf32>
    %cst_44 = arith.constant dense<0.000000e+00> : vector<128x128xf32>
    %75 = tpu.matmul %74, %72, %cst_44 {dimension_numbers = #tpu.dot_dimension_numbers<[1], [0], [0], [1], [0, 0, 1, 1], [], []>} : vector<128x32xf32>, vector<32x128xf32>, vector<128x128xf32> -> vector<128x128xf32>
    %c1_45 = arith.constant 1 : index
    %c0_46 = arith.constant 0 : index
    %c0_47 = arith.constant 0 : index
    %76 = vector.load %arg6[%c1_45, %c0_46, %c0_47] : memref<3x128x32xf32, #tpu.memory_space<vmem>>, vector<1x128x32xf32>
    %77 = vector.shape_cast %76 : vector<1x128x32xf32> to vector<128x32xf32>
    %cst_48 = arith.constant dense<0.000000e+00> : vector<128x128xf32>
    %78 = tpu.matmul %77, %57, %cst_48 {dimension_numbers = #tpu.dot_dimension_numbers<[1], [0], [0], [1], [0, 0, 1, 1], [], []>} : vector<128x32xf32>, vector<32x128xf32>, vector<128x128xf32> -> vector<128x128xf32>
    %79 = arith.addf %75, %78 : vector<128x128xf32>
    %c1_49 = arith.constant 1 : index
    %c0_50 = arith.constant 0 : index
    %c0_51 = arith.constant 0 : index
    %80 = vector.load %arg7[%c1_49, %c0_50, %c0_51] : memref<3x128x1xf32, #tpu.memory_space<vmem>>, vector<1x128x1xf32>
    %81 = vector.shape_cast %80 : vector<1x128x1xf32> to vector<128x1xf32>
    %82 = vector.broadcast %81 : vector<128x1xf32> to vector<128x128xf32>
    %83 = arith.addf %79, %82 : vector<128x128xf32>
    %84 = vector.extract_strided_slice %83 {offsets = [0, 0], sizes = [96, 128], strides = [1, 1]} : vector<128x128xf32> to vector<96x128xf32>
    %85 = arith.negf %84 : vector<96x128xf32>
    %86 = math.exp %85 : vector<96x128xf32>
    %cst_52 = arith.constant 1.000000e+00 : f32
    %87 = vector.broadcast %cst_52 : f32 to vector<96x128xf32>
    %88 = arith.addf %87, %86 : vector<96x128xf32>
    %89 = arith.divf %87, %88 : vector<96x128xf32>
    %90 = vector.extract_strided_slice %83 {offsets = [96, 0], sizes = [32, 128], strides = [1, 1]} : vector<128x128xf32> to vector<32x128xf32>
    %91 = math.tanh %90 : vector<32x128xf32>
    %92 = vector.extract_strided_slice %89 {offsets = [32, 0], sizes = [32, 128], strides = [1, 1]} : vector<96x128xf32> to vector<32x128xf32>
    %93 = arith.mulf %92, %54 : vector<32x128xf32>
    %94 = vector.extract_strided_slice %89 {offsets = [0, 0], sizes = [32, 128], strides = [1, 1]} : vector<96x128xf32> to vector<32x128xf32>
    %95 = arith.mulf %94, %91 : vector<32x128xf32>
    %96 = arith.addf %93, %95 : vector<32x128xf32>
    %97 = vector.extract_strided_slice %89 {offsets = [64, 0], sizes = [32, 128], strides = [1, 1]} : vector<96x128xf32> to vector<32x128xf32>
    %98 = math.tanh %96 : vector<32x128xf32>
    %99 = arith.mulf %97, %98 : vector<32x128xf32>
    %100 = vector.broadcast %20 : vector<32x1xf32> to vector<32x128xf32>
    %101 = arith.mulf %99, %100 : vector<32x128xf32>
    %cst_53 = arith.constant dense<0.000000e+00> : vector<128xf32>
    %102 = vector.multi_reduction <add>, %101, %cst_53 [0] : vector<32x128xf32> to vector<128xf32>
    %103 = vector.shape_cast %102 : vector<128xf32> to vector<1x128xf32>
    %104 = arith.maximumf %61, %103 : vector<1x128xf32>
    %105 = arith.subf %61, %104 : vector<1x128xf32>
    %106 = math.exp %105 : vector<1x128xf32>
    %107 = arith.subf %103, %104 : vector<1x128xf32>
    %108 = math.exp %107 : vector<1x128xf32>
    %109 = arith.mulf %62, %106 : vector<1x128xf32>
    %110 = arith.addf %109, %108 : vector<1x128xf32>
    %111 = vector.broadcast %106 : vector<1x128xf32> to vector<32x128xf32>
    %112 = arith.mulf %57, %111 : vector<32x128xf32>
    %113 = vector.broadcast %108 : vector<1x128xf32> to vector<32x128xf32>
    %114 = arith.mulf %113, %99 : vector<32x128xf32>
    %115 = arith.addf %112, %114 : vector<32x128xf32>
    %cst_54 = arith.constant dense<0.000000e+00> : vector<32x128xf32>
    %116 = tpu.matmul %99, %0, %cst_54 {dimension_numbers = #tpu.dot_dimension_numbers<[1], [0], [0], [1], [0, 0, 1, 1], [], []>} : vector<32x128xf32>, vector<128x128xf32>, vector<32x128xf32> -> vector<32x128xf32>
    %c2 = arith.constant 2 : index
    %c0_55 = arith.constant 0 : index
    %c0_56 = arith.constant 0 : index
    %117 = vector.load %arg8[%c2, %c0_55, %c0_56] : memref<3x32x32xf32, #tpu.memory_space<vmem>>, vector<1x32x32xf32>
    %118 = vector.shape_cast %117 : vector<1x32x32xf32> to vector<32x32xf32>
    %cst_57 = arith.constant dense<0.000000e+00> : vector<32x128xf32>
    %119 = tpu.matmul %118, %116, %cst_57 {dimension_numbers = #tpu.dot_dimension_numbers<[1], [0], [0], [1], [0, 0, 1, 1], [], []>} : vector<32x32xf32>, vector<32x128xf32>, vector<32x128xf32> -> vector<32x128xf32>
    %c2_58 = arith.constant 2 : index
    %c0_59 = arith.constant 0 : index
    %c0_60 = arith.constant 0 : index
    %120 = vector.load %arg9[%c2_58, %c0_59, %c0_60] : memref<3x32x1xf32, #tpu.memory_space<vmem>>, vector<1x32x1xf32>
    %121 = vector.shape_cast %120 : vector<1x32x1xf32> to vector<32x1xf32>
    %122 = vector.broadcast %121 : vector<32x1xf32> to vector<32x128xf32>
    %123 = arith.addf %119, %122 : vector<32x128xf32>
    %cst_61 = arith.constant 0.000000e+00 : f32
    %124 = vector.broadcast %cst_61 : f32 to vector<32x128xf32>
    %125 = arith.maximumf %123, %124 : vector<32x128xf32>
    %c2_62 = arith.constant 2 : index
    %c0_63 = arith.constant 0 : index
    %c0_64 = arith.constant 0 : index
    %126 = vector.load %arg5[%c2_62, %c0_63, %c0_64] : memref<3x128x32xf32, #tpu.memory_space<vmem>>, vector<1x128x32xf32>
    %127 = vector.shape_cast %126 : vector<1x128x32xf32> to vector<128x32xf32>
    %cst_65 = arith.constant dense<0.000000e+00> : vector<128x128xf32>
    %128 = tpu.matmul %127, %125, %cst_65 {dimension_numbers = #tpu.dot_dimension_numbers<[1], [0], [0], [1], [0, 0, 1, 1], [], []>} : vector<128x32xf32>, vector<32x128xf32>, vector<128x128xf32> -> vector<128x128xf32>
    %c2_66 = arith.constant 2 : index
    %c0_67 = arith.constant 0 : index
    %c0_68 = arith.constant 0 : index
    %129 = vector.load %arg6[%c2_66, %c0_67, %c0_68] : memref<3x128x32xf32, #tpu.memory_space<vmem>>, vector<1x128x32xf32>
    %130 = vector.shape_cast %129 : vector<1x128x32xf32> to vector<128x32xf32>
    %cst_69 = arith.constant dense<0.000000e+00> : vector<128x128xf32>
    %131 = tpu.matmul %130, %99, %cst_69 {dimension_numbers = #tpu.dot_dimension_numbers<[1], [0], [0], [1], [0, 0, 1, 1], [], []>} : vector<128x32xf32>, vector<32x128xf32>, vector<128x128xf32> -> vector<128x128xf32>
    %132 = arith.addf %128, %131 : vector<128x128xf32>
    %c2_70 = arith.constant 2 : index
    %c0_71 = arith.constant 0 : index
    %c0_72 = arith.constant 0 : index
    %133 = vector.load %arg7[%c2_70, %c0_71, %c0_72] : memref<3x128x1xf32, #tpu.memory_space<vmem>>, vector<1x128x1xf32>
    %134 = vector.shape_cast %133 : vector<1x128x1xf32> to vector<128x1xf32>
    %135 = vector.broadcast %134 : vector<128x1xf32> to vector<128x128xf32>
    %136 = arith.addf %132, %135 : vector<128x128xf32>
    %137 = vector.extract_strided_slice %136 {offsets = [0, 0], sizes = [96, 128], strides = [1, 1]} : vector<128x128xf32> to vector<96x128xf32>
    %138 = arith.negf %137 : vector<96x128xf32>
    %139 = math.exp %138 : vector<96x128xf32>
    %cst_73 = arith.constant 1.000000e+00 : f32
    %140 = vector.broadcast %cst_73 : f32 to vector<96x128xf32>
    %141 = arith.addf %140, %139 : vector<96x128xf32>
    %142 = arith.divf %140, %141 : vector<96x128xf32>
    %143 = vector.extract_strided_slice %136 {offsets = [96, 0], sizes = [32, 128], strides = [1, 1]} : vector<128x128xf32> to vector<32x128xf32>
    %144 = math.tanh %143 : vector<32x128xf32>
    %145 = vector.extract_strided_slice %142 {offsets = [32, 0], sizes = [32, 128], strides = [1, 1]} : vector<96x128xf32> to vector<32x128xf32>
    %146 = arith.mulf %145, %96 : vector<32x128xf32>
    %147 = vector.extract_strided_slice %142 {offsets = [0, 0], sizes = [32, 128], strides = [1, 1]} : vector<96x128xf32> to vector<32x128xf32>
    %148 = arith.mulf %147, %144 : vector<32x128xf32>
    %149 = arith.addf %146, %148 : vector<32x128xf32>
    %150 = vector.extract_strided_slice %142 {offsets = [64, 0], sizes = [32, 128], strides = [1, 1]} : vector<96x128xf32> to vector<32x128xf32>
    %151 = math.tanh %149 : vector<32x128xf32>
    %152 = arith.mulf %150, %151 : vector<32x128xf32>
    %153 = vector.broadcast %20 : vector<32x1xf32> to vector<32x128xf32>
    %154 = arith.mulf %152, %153 : vector<32x128xf32>
    %cst_74 = arith.constant dense<0.000000e+00> : vector<128xf32>
    %155 = vector.multi_reduction <add>, %154, %cst_74 [0] : vector<32x128xf32> to vector<128xf32>
    %156 = vector.shape_cast %155 : vector<128xf32> to vector<1x128xf32>
    %157 = arith.maximumf %104, %156 : vector<1x128xf32>
    %158 = arith.subf %104, %157 : vector<1x128xf32>
    %159 = math.exp %158 : vector<1x128xf32>
    %160 = arith.subf %156, %157 : vector<1x128xf32>
    %161 = math.exp %160 : vector<1x128xf32>
    %162 = arith.mulf %110, %159 : vector<1x128xf32>
    %163 = arith.addf %162, %161 : vector<1x128xf32>
    %164 = vector.broadcast %159 : vector<1x128xf32> to vector<32x128xf32>
    %165 = arith.mulf %115, %164 : vector<32x128xf32>
    %166 = vector.broadcast %161 : vector<1x128xf32> to vector<32x128xf32>
    %167 = arith.mulf %166, %152 : vector<32x128xf32>
    %168 = arith.addf %165, %167 : vector<32x128xf32>
    %169 = tpu.reciprocal %163 {approx = true} : vector<1x128xf32> -> vector<1x128xf32>
    %170 = vector.broadcast %169 : vector<1x128xf32> to vector<32x128xf32>
    %171 = arith.mulf %168, %170 : vector<32x128xf32>
    %c0_75 = arith.constant 0 : index
    %c0_76 = arith.constant 0 : index
    %172 = vector.load %arg11[%c0_75, %c0_76] : memref<32x128xf32, #tpu.memory_space<vmem>>, vector<32x128xf32>
    tpu.vector_store %arg11[%c0_75, %c0_76], %171 {strides = array<i32>} : memref<32x128xf32, #tpu.memory_space<vmem>>, vector<32x128xf32>,
    return
  }
  func.func @transform_0(%arg0: i32) -> (i32, i32) {
    %c0_i32 = arith.constant 0 : i32
    %c0_i32_0 = arith.constant 0 : i32
    %c0_i32_1 = arith.constant 0 : i32
    return %c0_i32, %c0_i32_0 : i32, i32
  }
  func.func @transform_1(%arg0: i32) -> (i32, i32) {
    %c0_i32 = arith.constant 0 : i32
    %c0_i32_0 = arith.constant 0 : i32
    %c0_i32_1 = arith.constant 0 : i32
    return %c0_i32, %c0_i32_0 : i32, i32
  }
  func.func @transform_2(%arg0: i32) -> (i32, i32) {
    %c0_i32 = arith.constant 0 : i32
    %c0_i32_0 = arith.constant 0 : i32
    %c0_i32_1 = arith.constant 0 : i32
    return %c0_i32, %c0_i32_0 : i32, i32
  }
  func.func @transform_3(%arg0: i32) -> (i32, i32) {
    %c0_i32 = arith.constant 0 : i32
    %c0_i32_0 = arith.constant 0 : i32
    %c0_i32_1 = arith.constant 0 : i32
    return %c0_i32, %c0_i32_0 : i32, i32
  }
  func.func @transform_4(%arg0: i32) -> (i32, i32, i32) {
    %c0_i32 = arith.constant 0 : i32
    %c0_i32_0 = arith.constant 0 : i32
    %c0_i32_1 = arith.constant 0 : i32
    %c0_i32_2 = arith.constant 0 : i32
    return %c0_i32, %c0_i32_0, %c0_i32_1 : i32, i32, i32
  }
  func.func @transform_5(%arg0: i32) -> (i32, i32, i32) {
    %c0_i32 = arith.constant 0 : i32
    %c0_i32_0 = arith.constant 0 : i32
    %c0_i32_1 = arith.constant 0 : i32
    %c0_i32_2 = arith.constant 0 : i32
    return %c0_i32, %c0_i32_0, %c0_i32_1 : i32, i32, i32
  }
  func.func @transform_6(%arg0: i32) -> (i32, i32, i32) {
    %c0_i32 = arith.constant 0 : i32
    %c0_i32_0 = arith.constant 0 : i32
    %c0_i32_1 = arith.constant 0 : i32
    %c0_i32_2 = arith.constant 0 : i32
    return %c0_i32, %c0_i32_0, %c0_i32_1 : i32, i32, i32
  }
  func.func @transform_7(%arg0: i32) -> (i32, i32, i32) {
    %c0_i32 = arith.constant 0 : i32
    %c0_i32_0 = arith.constant 0 : i32
    %c0_i32_1 = arith.constant 0 : i32
    %c0_i32_2 = arith.constant 0 : i32
    return %c0_i32, %c0_i32_0, %c0_i32_1 : i32, i32, i32
  }
  func.func @transform_8(%arg0: i32) -> (i32, i32, i32) {
    %c0_i32 = arith.constant 0 : i32
    %c0_i32_0 = arith.constant 0 : i32
    %c0_i32_1 = arith.constant 0 : i32
    %c0_i32_2 = arith.constant 0 : i32
    return %c0_i32, %c0_i32_0, %c0_i32_1 : i32, i32, i32
  }
  func.func @transform_9(%arg0: i32) -> (i32, i32) {
    %c0_i32 = arith.constant 0 : i32
    %c0_i32_0 = arith.constant 0 : i32
    %c0_i32_1 = arith.constant 0 : i32
    return %c0_i32, %c0_i32_0 : i32, i32
  }
  func.func @transform_10(%arg0: i32) -> (i32, i32) {
    %c0_i32 = arith.constant 0 : i32
    %c0_i32_0 = arith.constant 0 : i32
    %c0_i32_1 = arith.constant 0 : i32
    return %c0_i32, %c0_i32_0 : i32, i32
  }
}

</mosaic_0001>

<llo_original>
// kernel: tpu_custom_call.1
$region0: #{tpu_custom_call.1}
  #allocation0 [shape = 'u32[]', space=smem, size = 0x4, offset = 0x4, fixed_abs, tag = 'smem constant byte address 0x4 - core index']
  #allocation1 [shape = 'u32[72,128]{1,0:T(1,128)}', space=vmem, size = 0x9000, scoped, tag = 'internal scratch']
  %s0 = inlined_call_operand.vmem [shape: f32[16,128], index: 0, kind: input, shape index: {}]
  %s1 = inlined_call_operand.vmem [shape: f32[128,128], index: 1, kind: input, shape index: {}]
  %s2 = inlined_call_operand.vmem [shape: f32[96,16], index: 2, kind: input, shape index: {}]
  %s3 = inlined_call_operand.vmem [shape: f32[96,1], index: 3, kind: input, shape index: {}]
  %s4 = inlined_call_operand.vmem [shape: f32[3,128,32], index: 4, kind: input, shape index: {}]
  %s5 = inlined_call_operand.vmem [shape: f32[3,128,32], index: 5, kind: input, shape index: {}]
  %s6 = inlined_call_operand.vmem [shape: f32[3,128,1], index: 6, kind: input, shape index: {}]
  %s7 = inlined_call_operand.vmem [shape: f32[3,32,32], index: 7, kind: input, shape index: {}]
  %s8 = inlined_call_operand.vmem [shape: f32[3,32,1], index: 8, kind: input, shape index: {}]
  %s9 = inlined_call_operand.vmem [shape: f32[32,1], index: 9, kind: input, shape index: {}]
  %s10 = inlined_call_operand.hbm [shape: f32[32,128], index: 10, kind: output, shape index: {}]
  %s11 = sld [smem:[#allocation0]]
  $region50: #{tpu_custom_call.1} parent=0
    _
  %s13 = ssub.s32 1, %s11
  %s14 = scalar_select 0, %s13, %s11
  $region1: #{tpu_custom_call.1} parent=0
    #allocation2 [shape = 'u8[16384]{0}', space=vmem, size = 0x4000, scoped, tag = 'output window, operand 0, single buffered']
    #allocation3 [shape = 's32[1]{0}', space=sflag, size = 0x4, scoped, tag = 'scoped memory for tpu_custom_call.1']
    %15 = vsyncpa [#allocation3], 0
    // Predicated region
    $region2: #{tpu_custom_call.1} parent=1 // pred_check
      _
    $region3: #{tpu_custom_call.1} parent=1 // pred_check_branch
      %17 = sbr.rel (0) target = $region5
    $region4: #{tpu_custom_call.1} parent=1 // pred_region
      _
    $region5: #{tpu_custom_call.1} parent=1 // pred_fallthru
      _
    // Predicated region
    $region6: #{tpu_custom_call.1} parent=1 // pred_check
      _
    $region7: #{tpu_custom_call.1} parent=1 // pred_check_branch
      %19 = sbr.rel (0) target = $region9
    $region8: #{tpu_custom_call.1} parent=1 // pred_region
      _
    $region9: #{tpu_custom_call.1} parent=1 // pred_fallthru
      _
    // Predicated region
    $region10: #{tpu_custom_call.1} parent=1 // pred_check
      _
    $region11: #{tpu_custom_call.1} parent=1 // pred_check_branch
      %21 = sbr.rel (0) target = $region13
    $region12: #{tpu_custom_call.1} parent=1 // pred_region
      _
    $region13: #{tpu_custom_call.1} parent=1 // pred_fallthru
      _
    // Predicated region
    $region14: #{tpu_custom_call.1} parent=1 // pred_check
      _
    $region15: #{tpu_custom_call.1} parent=1 // pred_check_branch
      %23 = sbr.rel (0) target = $region17
    $region16: #{tpu_custom_call.1} parent=1 // pred_region
      _
    $region17: #{tpu_custom_call.1} parent=1 // pred_fallthru
      _
    // Predicated region
    $region18: #{tpu_custom_call.1} parent=1 // pred_check
      _
    $region19: #{tpu_custom_call.1} parent=1 // pred_check_branch
      %25 = sbr.rel (0) target = $region21
    $region20: #{tpu_custom_call.1} parent=1 // pred_region
      _
    $region21: #{tpu_custom_call.1} parent=1 // pred_fallthru
      _
    // Predicated region
    $region22: #{tpu_custom_call.1} parent=1 // pred_check
      _
    $region23: #{tpu_custom_call.1} parent=1 // pred_check_branch
      %27 = sbr.rel (0) target = $region25
    $region24: #{tpu_custom_call.1} parent=1 // pred_region
      _
    $region25: #{tpu_custom_call.1} parent=1 // pred_fallthru
      _
    // Predicated region
    $region26: #{tpu_custom_call.1} parent=1 // pred_check
      _
    $region27: #{tpu_custom_call.1} parent=1 // pred_check_branch
      %29 = sbr.rel (0) target = $region29
    $region28: #{tpu_custom_call.1} parent=1 // pred_region
      _
    $region29: #{tpu_custom_call.1} parent=1 // pred_fallthru
      _
    // Predicated region
    $region30: #{tpu_custom_call.1} parent=1 // pred_check
      _
    $region31: #{tpu_custom_call.1} parent=1 // pred_check_branch
      %31 = sbr.rel (0) target = $region33
    $region32: #{tpu_custom_call.1} parent=1 // pred_region
      _
    $region33: #{tpu_custom_call.1} parent=1 // pred_fallthru
      _
    // Predicated region
    $region34: #{tpu_custom_call.1} parent=1 // pred_check
      _
    $region35: #{tpu_custom_call.1} parent=1 // pred_check_branch
      %33 = sbr.rel (0) target = $region37
    $region36: #{tpu_custom_call.1} parent=1 // pred_region
      _
    $region37: #{tpu_custom_call.1} parent=1 // pred_fallthru
      _
    // Predicated region
    $region38: #{tpu_custom_call.1} parent=1 // pred_check
      _
    $region39: #{tpu_custom_call.1} parent=1 // pred_check_branch
      %35 = sbr.rel (0) target = $region41
    $region40: #{tpu_custom_call.1} parent=1 // pred_region
      _
    $region41: #{tpu_custom_call.1} parent=1 // pred_fallthru
      _
    %v36 = vld [vmem:[%s1] sm:$0xff]
    %v37 = vld [vmem:[%s1 + $0x8] sm:$0xff]
    %v38 = vld [vmem:[%s1 + $0x10] sm:$0xff]
    %v39 = vld [vmem:[%s1 + $0x18] sm:$0xff]
    %v40 = vld [vmem:[%s1 + $0x20] sm:$0xff]
    %v41 = vld [vmem:[%s1 + $0x28] sm:$0xff]
    %v42 = vld [vmem:[%s1 + $0x30] sm:$0xff]
    %v43 = vld [vmem:[%s1 + $0x38] sm:$0xff]
    %v44 = vld [vmem:[%s1 + $0x40] sm:$0xff]
    %v45 = vld [vmem:[%s1 + $0x48] sm:$0xff]
    %v46 = vld [vmem:[%s1 + $0x50] sm:$0xff]
    %v47 = vld [vmem:[%s1 + $0x58] sm:$0xff]
    %v48 = vld [vmem:[%s1 + $0x60] sm:$0xff]
    %v49 = vld [vmem:[%s1 + $0x68] sm:$0xff]
    %v50 = vld [vmem:[%s1 + $0x70] sm:$0xff]
    %v51 = vld [vmem:[%s1 + $0x78] sm:$0xff]
    %v52 = vld [vmem:[%s2] sm:$0xff]
    %v53 = vld [vmem:[%s2 + $0x8] sm:$0xff]
    %v54 = vld [vmem:[%s2 + $0x10] sm:$0xff]
    %v55 = vld [vmem:[%s2 + $0x18] sm:$0xff]
    %v56 = vld [vmem:[%s2 + $0x20] sm:$0xff]
    %v57 = vld [vmem:[%s2 + $0x28] sm:$0xff]
    %v58 = vld [vmem:[%s2 + $0x30] sm:$0xff]
    %v59 = vld [vmem:[%s2 + $0x38] sm:$0xff]
    %v60 = vld [vmem:[%s2 + $0x40] sm:$0xff]
    %v61 = vld [vmem:[%s2 + $0x48] sm:$0xff]
    %v62 = vld [vmem:[%s2 + $0x50] sm:$0xff]
    %v63 = vld [vmem:[%s2 + $0x58] sm:$0xff]
    %v64 = vld [vmem:[%s0] sm:$0xff]
    %v65 = vld [vmem:[%s0 + $0x8] sm:$0xff]
    %v66 = vld [vmem:[%s3] sm:$0xff]
    %v67 = vld [vmem:[%s3 + $0x8] sm:$0xff]
    %v68 = vld [vmem:[%s3 + $0x10] sm:$0xff]
    %v69 = vld [vmem:[%s3 + $0x18] sm:$0xff]
    %v70 = vld [vmem:[%s3 + $0x20] sm:$0xff]
    %v71 = vld [vmem:[%s3 + $0x28] sm:$0xff]
    %v72 = vld [vmem:[%s3 + $0x30] sm:$0xff]
    %v73 = vld [vmem:[%s3 + $0x38] sm:$0xff]
    %v74 = vld [vmem:[%s3 + $0x40] sm:$0xff]
    %v75 = vld [vmem:[%s3 + $0x48] sm:$0xff]
    %v76 = vld [vmem:[%s3 + $0x50] sm:$0xff]
    %v77 = vld [vmem:[%s3 + $0x58] sm:$0xff]
    %79 = vset.pattern.permute.xlu0 0
    %80 = vperm.xlu0 %79, %v66
    %v81 = vpop.permute.xlu0 %80
    %84 = vset.pattern.permute.xlu0 0
    %85 = vperm.xlu0 %84, %v67
    %v86 = vpop.permute.xlu0 %85
    %89 = vset.pattern.permute.xlu0 0
    %90 = vperm.xlu0 %89, %v68
    %v91 = vpop.permute.xlu0 %90
    %94 = vset.pattern.permute.xlu0 0
    %95 = vperm.xlu0 %94, %v69
    %v96 = vpop.permute.xlu0 %95
    %99 = vset.pattern.permute.xlu0 0
    %100 = vperm.xlu0 %99, %v70
    %v101 = vpop.permute.xlu0 %100
    %104 = vset.pattern.permute.xlu0 0
    %105 = vperm.xlu0 %104, %v71
    %v106 = vpop.permute.xlu0 %105
    %109 = vset.pattern.permute.xlu0 0
    %110 = vperm.xlu0 %109, %v72
    %v111 = vpop.permute.xlu0 %110
    %114 = vset.pattern.permute.xlu0 0
    %115 = vperm.xlu0 %114, %v73
    %v116 = vpop.permute.xlu0 %115
    %119 = vset.pattern.permute.xlu0 0
    %120 = vperm.xlu0 %119, %v74
    %v121 = vpop.permute.xlu0 %120
    %124 = vset.pattern.permute.xlu0 0
    %125 = vperm.xlu0 %124, %v75
    %v126 = vpop.permute.xlu0 %125
    %129 = vset.pattern.permute.xlu0 0
    %130 = vperm.xlu0 %129, %v76
    %v131 = vpop.permute.xlu0 %130
    %134 = vset.pattern.permute.xlu0 0
    %135 = vperm.xlu0 %134, %v77
    %v136 = vpop.permute.xlu0 %135
    %vm138 = vcmask 130048
    %v140 = vsel %vm138, %v52, 0
    %v143 = vsel %vm138, %v53, 0
    %v146 = vsel %vm138, %v54, 0
    %v149 = vsel %vm138, %v55, 0
    %v152 = vsel %vm138, %v56, 0
    %v155 = vsel %vm138, %v57, 0
    %v158 = vsel %vm138, %v58, 0
    %v161 = vsel %vm138, %v59, 0
    %v164 = vsel %vm138, %v60, 0
    %v167 = vsel %vm138, %v61, 0
    %v170 = vsel %vm138, %v62, 0
    %v173 = vsel %vm138, %v63, 0
    %175 = vmatpush.msra.mxu0 0.0
    %176 = vmatpush.msra.mxu0 0.0
    %177 = vmatpush.msra.mxu0 0.0
    %178 = vmatpush.msra.mxu0 0.0
    %179 = vmatpush.msra.mxu0 0.0
    %180 = vmatpush.msra.mxu0 0.0
    %181 = vmatpush.msra.mxu0 0.0
    %182 = vmatpush.msra.mxu0 0.0
    %183 = vmatpush.msra.mxu0 0.0
    %184 = vmatpush.msra.mxu0 0.0
    %185 = vmatpush.msra.mxu0 0.0
    %186 = vmatpush.msra.mxu0 0.0
    %187 = vmatpush.msra.mxu0 0.0
    %188 = vmatpush.msra.mxu0 0.0
    %189 = vmatpush.msra.mxu0 %v65
    %190 = vmatpush.msra.mxu0 %v64
    %191 = vmatmul.f32.gmra.mxu0 %v140
    %v192 = vpop.f32.mrf.mxu0
    %v193 = vadd.f32 %v81, %v192
    %194 = vmatmul.f32.gmra.mxu0 %v143
    %v195 = vpop.f32.mrf.mxu0
    %v196 = vadd.f32 %v86, %v195
    %197 = vmatmul.f32.gmra.mxu0 %v146
    %v198 = vpop.f32.mrf.mxu0
    %v199 = vadd.f32 %v91, %v198
    %200 = vmatmul.f32.gmra.mxu0 %v149
    %v201 = vpop.f32.mrf.mxu0
    %v202 = vadd.f32 %v96, %v201
    %203 = vmatmul.f32.gmra.mxu0 %v152
    %v204 = vpop.f32.mrf.mxu0
    %v205 = vadd.f32 %v101, %v204
    %206 = vmatmul.f32.gmra.mxu0 %v155
    %v207 = vpop.f32.mrf.mxu0
    %v208 = vadd.f32 %v106, %v207
    %209 = vmatmul.f32.gmra.mxu0 %v158
    %v210 = vpop.f32.mrf.mxu0
    %v211 = vadd.f32 %v111, %v210
    %212 = vmatmul.f32.gmra.mxu0 %v161
    %v213 = vpop.f32.mrf.mxu0
    %v214 = vadd.f32 %v116, %v213
    %215 = vmatmul.f32.gmra.mxu0 %v164
    %v216 = vpop.f32.mrf.mxu0
    %v217 = vadd.f32 %v121, %v216
    %218 = vmatmul.f32.gmra.mxu0 %v167
    %v219 = vpop.f32.mrf.mxu0
    %v220 = vadd.f32 %v126, %v219
    %221 = vmatmul.f32.gmra.mxu0 %v170
    %v222 = vpop.f32.mrf.mxu0
    %v223 = vadd.f32 %v131, %v222
    %224 = vmatmul.f32.gmra.mxu0 %v173
    %v225 = vpop.f32.mrf.mxu0
    %v226 = vadd.f32 %v136, %v225
    %227 = vdwg.mxu0
    %v228 = vxor.u32 %v193, 2147483648
    %v229 = vxor.u32 %v196, 2147483648
    %v230 = vxor.u32 %v199, 2147483648
    %v231 = vxor.u32 %v202, 2147483648
    %v232 = vxor.u32 %v205, 2147483648
    %v233 = vxor.u32 %v208, 2147483648
    %v234 = vxor.u32 %v211, 2147483648
    %v235 = vxor.u32 %v214, 2147483648
    %v236 = vmul.f32 %v228, 1.442695
    %v237 = vpow.pop %v236
    %v238 = vmul.f32 %v229, 1.442695
    %v239 = vpow.pop %v238
    %v240 = vmul.f32 %v230, 1.442695
    %v241 = vpow.pop %v240
    %v242 = vmul.f32 %v231, 1.442695
    %v243 = vpow.pop %v242
    %v244 = vmul.f32 %v232, 1.442695
    %v245 = vpow.pop %v244
    %v246 = vmul.f32 %v233, 1.442695
    %v247 = vpow.pop %v246
    %v248 = vmul.f32 %v234, 1.442695
    %v249 = vpow.pop %v248
    %v250 = vmul.f32 %v235, 1.442695
    %v251 = vpow.pop %v250
    %v252 = vadd.f32 %v237, 1.0
    %v253 = vadd.f32 %v239, 1.0
    %v254 = vadd.f32 %v241, 1.0
    %v255 = vadd.f32 %v243, 1.0
    %v256 = vadd.f32 %v245, 1.0
    %v257 = vadd.f32 %v247, 1.0
    %v258 = vadd.f32 %v249, 1.0
    %v259 = vadd.f32 %v251, 1.0
    %v260 = vrcp.pop %v252
    %v261 = vmul.f32 %v252, %v260
    %v262 = vsub.f32 1.0, %v261
    %v263 = vmul.f32 %v260, %v262
    %v264 = vadd.f32 %v260, %v263
    %vm265 = vweird.f32 %v252
    %vm266 = vweird.f32 %v260
    %vm267 = vmor %vm265, %vm266
    %v268 = vsel %vm267, %v260, %v264
    %v269 = vand.u32 2147483647, %v252
    %vm270 = vcmp.eq.f32.partialorder %v269, 8.507059e+37
    %v271 = vand.u32 %v252, 2147483648
    %v272 = vor.u32 1.1754944e-38, %v271
    %v273 = vsel %vm270, %v272, %v268
    %v274 = vmul.f32 1.0, %v273
    %v275 = vrcp.pop %v253
    %v276 = vmul.f32 %v253, %v275
    %v277 = vsub.f32 1.0, %v276
    %v278 = vmul.f32 %v275, %v277
    %v279 = vadd.f32 %v275, %v278
    %vm280 = vweird.f32 %v253
    %vm281 = vweird.f32 %v275
    %vm282 = vmor %vm280, %vm281
    %v283 = vsel %vm282, %v275, %v279
    %v284 = vand.u32 2147483647, %v253
    %vm285 = vcmp.eq.f32.partialorder %v284, 8.507059e+37
    %v286 = vand.u32 %v253, 2147483648
    %v287 = vor.u32 1.1754944e-38, %v286
    %v288 = vsel %vm285, %v287, %v283
    %v289 = vmul.f32 1.0, %v288
    %v290 = vrcp.pop %v254
    %v291 = vmul.f32 %v254, %v290
    %v292 = vsub.f32 1.0, %v291
    %v293 = vmul.f32 %v290, %v292
    %v294 = vadd.f32 %v290, %v293
    %vm295 = vweird.f32 %v254
    %vm296 = vweird.f32 %v290
    %vm297 = vmor %vm295, %vm296
    %v298 = vsel %vm297, %v290, %v294
    %v299 = vand.u32 2147483647, %v254
    %vm300 = vcmp.eq.f32.partialorder %v299, 8.507059e+37
    %v301 = vand.u32 %v254, 2147483648
    %v302 = vor.u32 1.1754944e-38, %v301
    %v303 = vsel %vm300, %v302, %v298
    %v304 = vmul.f32 1.0, %v303
    %v305 = vrcp.pop %v255
    %v306 = vmul.f32 %v255, %v305
    %v307 = vsub.f32 1.0, %v306
    %v308 = vmul.f32 %v305, %v307
    %v309 = vadd.f32 %v305, %v308
    %vm310 = vweird.f32 %v255
    %vm311 = vweird.f32 %v305
    %vm312 = vmor %vm310, %vm311
    %v313 = vsel %vm312, %v305, %v309
    %v314 = vand.u32 2147483647, %v255
    %vm315 = vcmp.eq.f32.partialorder %v314, 8.507059e+37
    %v316 = vand.u32 %v255, 2147483648
    %v317 = vor.u32 1.1754944e-38, %v316
    %v318 = vsel %vm315, %v317, %v313
    %v319 = vmul.f32 1.0, %v318
    %v320 = vrcp.pop %v256
    %v321 = vmul.f32 %v256, %v320
    %v322 = vsub.f32 1.0, %v321
    %v323 = vmul.f32 %v320, %v322
    %v324 = vadd.f32 %v320, %v323
    %vm325 = vweird.f32 %v256
    %vm326 = vweird.f32 %v320
    %vm327 = vmor %vm325, %vm326
    %v328 = vsel %vm327, %v320, %v324
    %v329 = vand.u32 2147483647, %v256
    %vm330 = vcmp.eq.f32.partialorder %v329, 8.507059e+37
    %v331 = vand.u32 %v256, 2147483648
    %v332 = vor.u32 1.1754944e-38, %v331
    %v333 = vsel %vm330, %v332, %v328
    %v334 = vmul.f32 1.0, %v333
    %v335 = vrcp.pop %v257
    %v336 = vmul.f32 %v257, %v335
    %v337 = vsub.f32 1.0, %v336
    %v338 = vmul.f32 %v335, %v337
    %v339 = vadd.f32 %v335, %v338
    %vm340 = vweird.f32 %v257
    %vm341 = vweird.f32 %v335
    %vm342 = vmor %vm340, %vm341
    %v343 = vsel %vm342, %v335, %v339
    %v344 = vand.u32 2147483647, %v257
    %vm345 = vcmp.eq.f32.partialorder %v344, 8.507059e+37
    %v346 = vand.u32 %v257, 2147483648
    %v347 = vor.u32 1.1754944e-38, %v346
    %v348 = vsel %vm345, %v347, %v343
    %v349 = vmul.f32 1.0, %v348
    %v350 = vrcp.pop %v258
    %v351 = vmul.f32 %v258, %v350
    %v352 = vsub.f32 1.0, %v351
    %v353 = vmul.f32 %v350, %v352
    %v354 = vadd.f32 %v350, %v353
    %vm355 = vweird.f32 %v258
    %vm356 = vweird.f32 %v350
    %vm357 = vmor %vm355, %vm356
    %v358 = vsel %vm357, %v350, %v354
    %v359 = vand.u32 2147483647, %v258
    %vm360 = vcmp.eq.f32.partialorder %v359, 8.507059e+37
    %v361 = vand.u32 %v258, 2147483648
    %v362 = vor.u32 1.1754944e-38, %v361
    %v363 = vsel %vm360, %v362, %v358
    %v364 = vmul.f32 1.0, %v363
    %v365 = vrcp.pop %v259
    %v366 = vmul.f32 %v259, %v365
    %v367 = vsub.f32 1.0, %v366
    %v368 = vmul.f32 %v365, %v367
    %v369 = vadd.f32 %v365, %v368
    %vm370 = vweird.f32 %v259
    %vm371 = vweird.f32 %v365
    %vm372 = vmor %vm370, %vm371
    %v373 = vsel %vm372, %v365, %v369
    %v374 = vand.u32 2147483647, %v259
    %vm375 = vcmp.eq.f32.partialorder %v374, 8.507059e+37
    %v376 = vand.u32 %v259, 2147483648
    %v377 = vor.u32 1.1754944e-38, %v376
    %v378 = vsel %vm375, %v377, %v373
    %v379 = vmul.f32 1.0, %v378
    %v380 = vtanh.pop %v217
    %v381 = vtanh.pop %v220
    %v382 = vtanh.pop %v223
    %v383 = vtanh.pop %v226
    %v384 = vmul.f32 %v274, %v380
    %v385 = vmul.f32 %v289, %v381
    %v386 = vmul.f32 %v304, %v382
    %v387 = vmul.f32 %v319, %v383
    %v388 = vtanh.pop %v384
    %v389 = vtanh.pop %v385
    %v390 = vtanh.pop %v386
    %v391 = vtanh.pop %v387
    %v392 = vmul.f32 %v334, %v388
    %v393 = vmul.f32 %v349, %v389
    %v394 = vmul.f32 %v364, %v390
    %v395 = vmul.f32 %v379, %v391
    %v396 = vld [vmem:[%s9] sm:$0xff]
    %v397 = vld [vmem:[%s9 + $0x8] sm:$0xff]
    %v398 = vld [vmem:[%s9 + $0x10] sm:$0xff]
    %v399 = vld [vmem:[%s9 + $0x18] sm:$0xff]
    %400 = vmatpush.msra.mxu0 %v51
    %401 = vmatpush.msra.mxu0 %v50
    %402 = vmatpush.msra.mxu0 %v49
    %403 = vmatpush.msra.mxu0 %v48
    %404 = vmatpush.msra.mxu0 %v47
    %405 = vmatpush.msra.mxu0 %v46
    %406 = vmatpush.msra.mxu0 %v45
    %407 = vmatpush.msra.mxu0 %v44
    %408 = vmatpush.msra.mxu0 %v43
    %409 = vmatpush.msra.mxu0 %v42
    %410 = vmatpush.msra.mxu0 %v41
    %411 = vmatpush.msra.mxu0 %v40
    %412 = vmatpush.msra.mxu0 %v39
    %413 = vmatpush.msra.mxu0 %v38
    %414 = vmatpush.msra.mxu0 %v37
    %415 = vmatpush.msra.mxu0 %v36
    %416 = vmatmul.f32.gmra.mxu0 %v392
    %v417 = vpop.f32.mrf.mxu0
    %v418 = vadd.f32 0.0, %v417
    %419 = vmatmul.f32.gmra.mxu0 %v393
    %v420 = vpop.f32.mrf.mxu0
    %v421 = vadd.f32 0.0, %v420
    %422 = vmatmul.f32.gmra.mxu0 %v394
    %v423 = vpop.f32.mrf.mxu0
    %v424 = vadd.f32 0.0, %v423
    %425 = vmatmul.f32.gmra.mxu0 %v395
    %v426 = vpop.f32.mrf.mxu0
    %v427 = vadd.f32 0.0, %v426
    %428 = vdwg.mxu0
    %v429 = vld [vmem:[%s7] sm:$0xff]
    %v430 = vld [vmem:[%s7 + $0x8] sm:$0xff]
    %v431 = vld [vmem:[%s7 + $0x10] sm:$0xff]
    %v432 = vld [vmem:[%s7 + $0x18] sm:$0xff]
    %v433 = vld [vmem:[%s8] sm:$0xff]
    %v434 = vld [vmem:[%s8 + $0x8] sm:$0xff]
    %v435 = vld [vmem:[%s8 + $0x10] sm:$0xff]
    %v436 = vld [vmem:[%s8 + $0x18] sm:$0xff]
    %438 = vset.pattern.permute.xlu0 0
    %439 = vperm.xlu0 %438, %v433
    %v440 = vpop.permute.xlu0 %439
    %443 = vset.pattern.permute.xlu0 0
    %444 = vperm.xlu0 %443, %v434
    %v445 = vpop.permute.xlu0 %444
    %448 = vset.pattern.permute.xlu0 0
    %449 = vperm.xlu0 %448, %v435
    %v450 = vpop.permute.xlu0 %449
    %453 = vset.pattern.permute.xlu0 0
    %454 = vperm.xlu0 %453, %v436
    %v455 = vpop.permute.xlu0 %454
    %vm457 = vcmask 261120
    %v459 = vsel %vm457, %v429, 0
    %v462 = vsel %vm457, %v430, 0
    %v465 = vsel %vm457, %v431, 0
    %v468 = vsel %vm457, %v432, 0
    %470 = vmatpush.msra.mxu0 0.0
    %471 = vmatpush.msra.mxu0 0.0
    %472 = vmatpush.msra.mxu0 0.0
    %473 = vmatpush.msra.mxu0 0.0
    %474 = vmatpush.msra.mxu0 0.0
    %475 = vmatpush.msra.mxu0 0.0
    %476 = vmatpush.msra.mxu0 0.0
    %477 = vmatpush.msra.mxu0 0.0
    %478 = vmatpush.msra.mxu0 0.0
    %479 = vmatpush.msra.mxu0 0.0
    %480 = vmatpush.msra.mxu0 0.0
    %481 = vmatpush.msra.mxu0 0.0
    %482 = vmatpush.msra.mxu0 %v427
    %483 = vmatpush.msra.mxu0 %v424
    %484 = vmatpush.msra.mxu0 %v421
    %485 = vmatpush.msra.mxu0 %v418
    %486 = vmatmul.f32.gmra.mxu0 %v459
    %v487 = vpop.f32.mrf.mxu0
    %v488 = vadd.f32 %v440, %v487
    %489 = vmatmul.f32.gmra.mxu0 %v462
    %v490 = vpop.f32.mrf.mxu0
    %v491 = vadd.f32 %v445, %v490
    %492 = vmatmul.f32.gmra.mxu0 %v465
    %v493 = vpop.f32.mrf.mxu0
    %v494 = vadd.f32 %v450, %v493
    %495 = vmatmul.f32.gmra.mxu0 %v468
    %v496 = vpop.f32.mrf.mxu0
    %v497 = vadd.f32 %v455, %v496
    %498 = vdwg.mxu0
    %v499 = vmax.f32 %v488, 0.0
    %v500 = vmax.f32 %v491, 0.0
    %v501 = vmax.f32 %v494, 0.0
    %v502 = vmax.f32 %v497, 0.0
    %v503 = vld [vmem:[%s4] sm:$0xff]
    %v504 = vld [vmem:[%s4 + $0x8] sm:$0xff]
    %v505 = vld [vmem:[%s4 + $0x10] sm:$0xff]
    %v506 = vld [vmem:[%s4 + $0x18] sm:$0xff]
    %v507 = vld [vmem:[%s4 + $0x20] sm:$0xff]
    %v508 = vld [vmem:[%s4 + $0x28] sm:$0xff]
    %v509 = vld [vmem:[%s4 + $0x30] sm:$0xff]
    %v510 = vld [vmem:[%s4 + $0x38] sm:$0xff]
    %v511 = vld [vmem:[%s4 + $0x40] sm:$0xff]
    %v512 = vld [vmem:[%s4 + $0x48] sm:$0xff]
    %v513 = vld [vmem:[%s4 + $0x50] sm:$0xff]
    %v514 = vld [vmem:[%s4 + $0x58] sm:$0xff]
    %v515 = vld [vmem:[%s4 + $0x60] sm:$0xff]
    %v516 = vld [vmem:[%s4 + $0x68] sm:$0xff]
    %v517 = vld [vmem:[%s4 + $0x70] sm:$0xff]
    %v518 = vld [vmem:[%s4 + $0x78] sm:$0xff]
    %v519 = vld [vmem:[%s5] sm:$0xff]
    %v520 = vld [vmem:[%s5 + $0x8] sm:$0xff]
    %v521 = vld [vmem:[%s5 + $0x10] sm:$0xff]
    %v522 = vld [vmem:[%s5 + $0x18] sm:$0xff]
    %v523 = vld [vmem:[%s5 + $0x20] sm:$0xff]
    %v524 = vld [vmem:[%s5 + $0x28] sm:$0xff]
    %v525 = vld [vmem:[%s5 + $0x30] sm:$0xff]
    %v526 = vld [vmem:[%s5 + $0x38] sm:$0xff]
    %v527 = vld [vmem:[%s5 + $0x40] sm:$0xff]
    %v528 = vld [vmem:[%s5 + $0x48] sm:$0xff]
    %v529 = vld [vmem:[%s5 + $0x50] sm:$0xff]
    %v530 = vld [vmem:[%s5 + $0x58] sm:$0xff]
    %v531 = vld [vmem:[%s5 + $0x60] sm:$0xff]
    %v532 = vld [vmem:[%s5 + $0x68] sm:$0xff]
    %v533 = vld [vmem:[%s5 + $0x70] sm:$0xff]
    %v534 = vld [vmem:[%s5 + $0x78] sm:$0xff]
    %v536 = vsel %vm457, %v519, 0
    %v539 = vsel %vm457, %v520, 0
    %v542 = vsel %vm457, %v521, 0
    %v545 = vsel %vm457, %v522, 0
    %v548 = vsel %vm457, %v523, 0
    %v551 = vsel %vm457, %v524, 0
    %v554 = vsel %vm457, %v525, 0
    %v557 = vsel %vm457, %v526, 0
    %v560 = vsel %vm457, %v527, 0
    %v563 = vsel %vm457, %v528, 0
    %v566 = vsel %vm457, %v529, 0
    %v569 = vsel %vm457, %v530, 0
    %v572 = vsel %vm457, %v531, 0
    %v575 = vsel %vm457, %v532, 0
    %v578 = vsel %vm457, %v533, 0
    %v581 = vsel %vm457, %v534, 0
    %583 = vmatpush.msra.mxu0 0.0
    %584 = vmatpush.msra.mxu0 0.0
    %585 = vmatpush.msra.mxu0 0.0
    %586 = vmatpush.msra.mxu0 0.0
    %587 = vmatpush.msra.mxu0 0.0
    %588 = vmatpush.msra.mxu0 0.0
    %589 = vmatpush.msra.mxu0 0.0
    %590 = vmatpush.msra.mxu0 0.0
    %591 = vmatpush.msra.mxu0 0.0
    %592 = vmatpush.msra.mxu0 0.0
    %593 = vmatpush.msra.mxu0 0.0
    %594 = vmatpush.msra.mxu0 0.0
    %595 = vmatpush.msra.mxu0 %v395
    %596 = vmatpush.msra.mxu0 %v394
    %597 = vmatpush.msra.mxu0 %v393
    %598 = vmatpush.msra.mxu0 %v392
    %599 = vmatmul.f32.gmra.mxu0 %v536
    %v600 = vpop.f32.mrf.mxu0
    %v601 = vadd.f32 0.0, %v600
    %602 = vmatmul.f32.gmra.mxu0 %v539
    %v603 = vpop.f32.mrf.mxu0
    %v604 = vadd.f32 0.0, %v603
    %605 = vmatmul.f32.gmra.mxu0 %v542
    %v606 = vpop.f32.mrf.mxu0
    %v607 = vadd.f32 0.0, %v606
    %608 = vmatmul.f32.gmra.mxu0 %v545
    %v609 = vpop.f32.mrf.mxu0
    %v610 = vadd.f32 0.0, %v609
    %611 = vmatmul.f32.gmra.mxu0 %v548
    %v612 = vpop.f32.mrf.mxu0
    %v613 = vadd.f32 0.0, %v612
    %614 = vmatmul.f32.gmra.mxu0 %v551
    %v615 = vpop.f32.mrf.mxu0
    %v616 = vadd.f32 0.0, %v615
    %617 = vmatmul.f32.gmra.mxu0 %v554
    %v618 = vpop.f32.mrf.mxu0
    %v619 = vadd.f32 0.0, %v618
    %620 = vmatmul.f32.gmra.mxu0 %v557
    %v621 = vpop.f32.mrf.mxu0
    %v622 = vadd.f32 0.0, %v621
    %623 = vmatmul.f32.gmra.mxu0 %v560
    %v624 = vpop.f32.mrf.mxu0
    %v625 = vadd.f32 0.0, %v624
    %626 = vmatmul.f32.gmra.mxu0 %v563
    %v627 = vpop.f32.mrf.mxu0
    %v628 = vadd.f32 0.0, %v627
    %629 = vmatmul.f32.gmra.mxu0 %v566
    %v630 = vpop.f32.mrf.mxu0
    %v631 = vadd.f32 0.0, %v630
    %632 = vmatmul.f32.gmra.mxu0 %v569
    %v633 = vpop.f32.mrf.mxu0
    %v634 = vadd.f32 0.0, %v633
    %635 = vmatmul.f32.gmra.mxu0 %v572
    %v636 = vpop.f32.mrf.mxu0
    %v637 = vadd.f32 0.0, %v636
    %638 = vmatmul.f32.gmra.mxu0 %v575
    %v639 = vpop.f32.mrf.mxu0
    %v640 = vadd.f32 0.0, %v639
    %641 = vmatmul.f32.gmra.mxu0 %v578
    %v642 = vpop.f32.mrf.mxu0
    %v643 = vadd.f32 0.0, %v642
    %644 = vmatmul.f32.gmra.mxu0 %v581
    %v645 = vpop.f32.mrf.mxu0
    %v646 = vadd.f32 0.0, %v645
    %647 = vdwg.mxu0
    %v649 = vsel %vm457, %v503, 0
    %v652 = vsel %vm457, %v504, 0
    %v655 = vsel %vm457, %v505, 0
    %v658 = vsel %vm457, %v506, 0
    %v661 = vsel %vm457, %v507, 0
    %v664 = vsel %vm457, %v508, 0
    %v667 = vsel %vm457, %v509, 0
    %v670 = vsel %vm457, %v510, 0
    %v673 = vsel %vm457, %v511, 0
    %v676 = vsel %vm457, %v512, 0
    %v679 = vsel %vm457, %v513, 0
    %v682 = vsel %vm457, %v514, 0
    %v685 = vsel %vm457, %v515, 0
    %v688 = vsel %vm457, %v516, 0
    %v691 = vsel %vm457, %v517, 0
    %v694 = vsel %vm457, %v518, 0
    %696 = vmatpush.msra.mxu0 0.0
    %697 = vmatpush.msra.mxu0 0.0
    %698 = vmatpush.msra.mxu0 0.0
    %699 = vmatpush.msra.mxu0 0.0
    %700 = vmatpush.msra.mxu0 0.0
    %701 = vmatpush.msra.mxu0 0.0
    %702 = vmatpush.msra.mxu0 0.0
    %703 = vmatpush.msra.mxu0 0.0
    %704 = vmatpush.msra.mxu0 0.0
    %705 = vmatpush.msra.mxu0 0.0
    %706 = vmatpush.msra.mxu0 0.0
    %707 = vmatpush.msra.mxu0 0.0
    %708 = vmatpush.msra.mxu0 %v502
    %709 = vmatpush.msra.mxu0 %v501
    %710 = vmatpush.msra.mxu0 %v500
    %711 = vmatpush.msra.mxu0 %v499
    %712 = vmatmul.f32.gmra.mxu0 %v649
    %v713 = vpop.f32.mrf.mxu0
    %v714 = vadd.f32 %v601, %v713
    %715 = vmatmul.f32.gmra.mxu0 %v652
    %v716 = vpop.f32.mrf.mxu0
    %v717 = vadd.f32 %v604, %v716
    %718 = vmatmul.f32.gmra.mxu0 %v655
    %v719 = vpop.f32.mrf.mxu0
    %v720 = vadd.f32 %v607, %v719
    %721 = vmatmul.f32.gmra.mxu0 %v658
    %v722 = vpop.f32.mrf.mxu0
    %v723 = vadd.f32 %v610, %v722
    %724 = vmatmul.f32.gmra.mxu0 %v661
    %v725 = vpop.f32.mrf.mxu0
    %v726 = vadd.f32 %v613, %v725
    %727 = vmatmul.f32.gmra.mxu0 %v664
    %v728 = vpop.f32.mrf.mxu0
    %v729 = vadd.f32 %v616, %v728
    %730 = vmatmul.f32.gmra.mxu0 %v667
    %v731 = vpop.f32.mrf.mxu0
    %v732 = vadd.f32 %v619, %v731
    %733 = vmatmul.f32.gmra.mxu0 %v670
    %v734 = vpop.f32.mrf.mxu0
    %v735 = vadd.f32 %v622, %v734
    %736 = vmatmul.f32.gmra.mxu0 %v673
    %v737 = vpop.f32.mrf.mxu0
    %v738 = vadd.f32 %v625, %v737
    %739 = vmatmul.f32.gmra.mxu0 %v676
    %v740 = vpop.f32.mrf.mxu0
    %v741 = vadd.f32 %v628, %v740
    %742 = vmatmul.f32.gmra.mxu0 %v679
    %v743 = vpop.f32.mrf.mxu0
    %v744 = vadd.f32 %v631, %v743
    %745 = vmatmul.f32.gmra.mxu0 %v682
    %v746 = vpop.f32.mrf.mxu0
    %v747 = vadd.f32 %v634, %v746
    %748 = vmatmul.f32.gmra.mxu0 %v685
    %v749 = vpop.f32.mrf.mxu0
    %v750 = vadd.f32 %v637, %v749
    %751 = vmatmul.f32.gmra.mxu0 %v688
    %v752 = vpop.f32.mrf.mxu0
    %v753 = vadd.f32 %v640, %v752
    %754 = vmatmul.f32.gmra.mxu0 %v691
    %v755 = vpop.f32.mrf.mxu0
    %v756 = vadd.f32 %v643, %v755
    %757 = vmatmul.f32.gmra.mxu0 %v694
    %v758 = vpop.f32.mrf.mxu0
    %v759 = vadd.f32 %v646, %v758
    %760 = vdwg.mxu0
    %v761 = vld [vmem:[%s6] sm:$0xff]
    %v762 = vld [vmem:[%s6 + $0x8] sm:$0xff]
    %v763 = vld [vmem:[%s6 + $0x10] sm:$0xff]
    %v764 = vld [vmem:[%s6 + $0x18] sm:$0xff]
    %v765 = vld [vmem:[%s6 + $0x20] sm:$0xff]
    %v766 = vld [vmem:[%s6 + $0x28] sm:$0xff]
    %v767 = vld [vmem:[%s6 + $0x30] sm:$0xff]
    %v768 = vld [vmem:[%s6 + $0x38] sm:$0xff]
    %v769 = vld [vmem:[%s6 + $0x40] sm:$0xff]
    %v770 = vld [vmem:[%s6 + $0x48] sm:$0xff]
    %v771 = vld [vmem:[%s6 + $0x50] sm:$0xff]
    %v772 = vld [vmem:[%s6 + $0x58] sm:$0xff]
    %v773 = vld [vmem:[%s6 + $0x60] sm:$0xff]
    %v774 = vld [vmem:[%s6 + $0x68] sm:$0xff]
    %v775 = vld [vmem:[%s6 + $0x70] sm:$0xff]
    %v776 = vld [vmem:[%s6 + $0x78] sm:$0xff]
    %778 = vset.pattern.permute.xlu0 0
    %779 = vperm.xlu0 %778, %v761
    %v780 = vpop.permute.xlu0 %779
    %783 = vset.pattern.permute.xlu0 0
    %784 = vperm.xlu0 %783, %v762
    %v785 = vpop.permute.xlu0 %784
    %788 = vset.pattern.permute.xlu0 0
    %789 = vperm.xlu0 %788, %v763
    %v790 = vpop.permute.xlu0 %789
    %793 = vset.pattern.permute.xlu0 0
    %794 = vperm.xlu0 %793, %v764
    %v795 = vpop.permute.xlu0 %794
    %798 = vset.pattern.permute.xlu0 0
    %799 = vperm.xlu0 %798, %v765
    %v800 = vpop.permute.xlu0 %799
    %803 = vset.pattern.permute.xlu0 0
    %804 = vperm.xlu0 %803, %v766
    %v805 = vpop.permute.xlu0 %804
    %808 = vset.pattern.permute.xlu0 0
    %809 = vperm.xlu0 %808, %v767
    %v810 = vpop.permute.xlu0 %809
    %813 = vset.pattern.permute.xlu0 0
    %814 = vperm.xlu0 %813, %v768
    %v815 = vpop.permute.xlu0 %814
    %818 = vset.pattern.permute.xlu0 0
    %819 = vperm.xlu0 %818, %v769
    %v820 = vpop.permute.xlu0 %819
    %823 = vset.pattern.permute.xlu0 0
    %824 = vperm.xlu0 %823, %v770
    %v825 = vpop.permute.xlu0 %824
    %828 = vset.pattern.permute.xlu0 0
    %829 = vperm.xlu0 %828, %v771
    %v830 = vpop.permute.xlu0 %829
    %833 = vset.pattern.permute.xlu0 0
    %834 = vperm.xlu0 %833, %v772
    %v835 = vpop.permute.xlu0 %834
    %838 = vset.pattern.permute.xlu0 0
    %839 = vperm.xlu0 %838, %v773
    %v840 = vpop.permute.xlu0 %839
    %843 = vset.pattern.permute.xlu0 0
    %844 = vperm.xlu0 %843, %v774
    %v845 = vpop.permute.xlu0 %844
    %848 = vset.pattern.permute.xlu0 0
    %849 = vperm.xlu0 %848, %v775
    %v850 = vpop.permute.xlu0 %849
    %853 = vset.pattern.permute.xlu0 0
    %854 = vperm.xlu0 %853, %v776
    %v855 = vpop.permute.xlu0 %854
    %v857 = vadd.f32 %v714, %v780
    %v858 = vadd.f32 %v717, %v785
    %v859 = vadd.f32 %v720, %v790
    %v860 = vadd.f32 %v723, %v795
    %v861 = vadd.f32 %v726, %v800
    %v862 = vadd.f32 %v729, %v805
    %v863 = vadd.f32 %v732, %v810
    %v864 = vadd.f32 %v735, %v815
    %v865 = vadd.f32 %v738, %v820
    %v866 = vadd.f32 %v741, %v825
    %v867 = vadd.f32 %v744, %v830
    %v868 = vadd.f32 %v747, %v835
    %v869 = vadd.f32 %v750, %v840
    %v870 = vadd.f32 %v753, %v845
    %v871 = vadd.f32 %v756, %v850
    %v872 = vadd.f32 %v759, %v855
    %v873 = vxor.u32 %v857, 2147483648
    %v874 = vxor.u32 %v858, 2147483648
    %v875 = vxor.u32 %v859, 2147483648
    %v876 = vxor.u32 %v860, 2147483648
    %v877 = vxor.u32 %v861, 2147483648
    %v878 = vxor.u32 %v862, 2147483648
    %v879 = vxor.u32 %v863, 2147483648
    %v880 = vxor.u32 %v864, 2147483648
    %v881 = vxor.u32 %v865, 2147483648
    %v882 = vxor.u32 %v866, 2147483648
    %v883 = vxor.u32 %v867, 2147483648
    %v884 = vxor.u32 %v868, 2147483648
    %v885 = vmul.f32 %v873, 1.442695
    %v886 = vpow.pop %v885
    %v887 = vmul.f32 %v874, 1.442695
    %v888 = vpow.pop %v887
    %v889 = vmul.f32 %v875, 1.442695
    %v890 = vpow.pop %v889
    %v891 = vmul.f32 %v876, 1.442695
    %v892 = vpow.pop %v891
    %v893 = vmul.f32 %v877, 1.442695
    %v894 = vpow.pop %v893
    %v895 = vmul.f32 %v878, 1.442695
    %v896 = vpow.pop %v895
    %v897 = vmul.f32 %v879, 1.442695
    %v898 = vpow.pop %v897
    %v899 = vmul.f32 %v880, 1.442695
    %v900 = vpow.pop %v899
    %v901 = vmul.f32 %v881, 1.442695
    %v902 = vpow.pop %v901
    %v903 = vmul.f32 %v882, 1.442695
    %v904 = vpow.pop %v903
    %v905 = vmul.f32 %v883, 1.442695
    %v906 = vpow.pop %v905
    %v907 = vmul.f32 %v884, 1.442695
    %v908 = vpow.pop %v907
    %v909 = vadd.f32 %v886, 1.0
    %v910 = vadd.f32 %v888, 1.0
    %v911 = vadd.f32 %v890, 1.0
    %v912 = vadd.f32 %v892, 1.0
    %v913 = vadd.f32 %v894, 1.0
    %v914 = vadd.f32 %v896, 1.0
    %v915 = vadd.f32 %v898, 1.0
    %v916 = vadd.f32 %v900, 1.0
    %v917 = vadd.f32 %v902, 1.0
    %v918 = vadd.f32 %v904, 1.0
    %v919 = vadd.f32 %v906, 1.0
    %v920 = vadd.f32 %v908, 1.0
    %v921 = vrcp.pop %v909
    %v922 = vmul.f32 %v909, %v921
    %v923 = vsub.f32 1.0, %v922
    %v924 = vmul.f32 %v921, %v923
    %v925 = vadd.f32 %v921, %v924
    %vm926 = vweird.f32 %v909
    %vm927 = vweird.f32 %v921
    %vm928 = vmor %vm926, %vm927
    %v929 = vsel %vm928, %v921, %v925
    %v930 = vand.u32 2147483647, %v909
    %vm931 = vcmp.eq.f32.partialorder %v930, 8.507059e+37
    %v932 = vand.u32 %v909, 2147483648
    %v933 = vor.u32 1.1754944e-38, %v932
    %v934 = vsel %vm931, %v933, %v929
    %v935 = vmul.f32 1.0, %v934
    %v936 = vrcp.pop %v910
    %v937 = vmul.f32 %v910, %v936
    %v938 = vsub.f32 1.0, %v937
    %v939 = vmul.f32 %v936, %v938
    %v940 = vadd.f32 %v936, %v939
    %vm941 = vweird.f32 %v910
    %vm942 = vweird.f32 %v936
    %vm943 = vmor %vm941, %vm942
    %v944 = vsel %vm943, %v936, %v940
    %v945 = vand.u32 2147483647, %v910
    %vm946 = vcmp.eq.f32.partialorder %v945, 8.507059e+37
    %v947 = vand.u32 %v910, 2147483648
    %v948 = vor.u32 1.1754944e-38, %v947
    %v949 = vsel %vm946, %v948, %v944
    %v950 = vmul.f32 1.0, %v949
    %v951 = vrcp.pop %v911
    %v952 = vmul.f32 %v911, %v951
    %v953 = vsub.f32 1.0, %v952
    %v954 = vmul.f32 %v951, %v953
    %v955 = vadd.f32 %v951, %v954
    %vm956 = vweird.f32 %v911
    %vm957 = vweird.f32 %v951
    %vm958 = vmor %vm956, %vm957
    %v959 = vsel %vm958, %v951, %v955
    %v960 = vand.u32 2147483647, %v911
    %vm961 = vcmp.eq.f32.partialorder %v960, 8.507059e+37
    %v962 = vand.u32 %v911, 2147483648
    %v963 = vor.u32 1.1754944e-38, %v962
    %v964 = vsel %vm961, %v963, %v959
    %v965 = vmul.f32 1.0, %v964
    %v966 = vrcp.pop %v912
    %v967 = vmul.f32 %v912, %v966
    %v968 = vsub.f32 1.0, %v967
    %v969 = vmul.f32 %v966, %v968
    %v970 = vadd.f32 %v966, %v969
    %vm971 = vweird.f32 %v912
    %vm972 = vweird.f32 %v966
    %vm973 = vmor %vm971, %vm972
    %v974 = vsel %vm973, %v966, %v970
    %v975 = vand.u32 2147483647, %v912
    %vm976 = vcmp.eq.f32.partialorder %v975, 8.507059e+37
    %v977 = vand.u32 %v912, 2147483648
    %v978 = vor.u32 1.1754944e-38, %v977
    %v979 = vsel %vm976, %v978, %v974
    %v980 = vmul.f32 1.0, %v979
    %v981 = vrcp.pop %v913
    %v982 = vmul.f32 %v913, %v981
    %v983 = vsub.f32 1.0, %v982
    %v984 = vmul.f32 %v981, %v983
    %v985 = vadd.f32 %v981, %v984
    %vm986 = vweird.f32 %v913
    %vm987 = vweird.f32 %v981
    %vm988 = vmor %vm986, %vm987
    %v989 = vsel %vm988, %v981, %v985
    %v990 = vand.u32 2147483647, %v913
    %vm991 = vcmp.eq.f32.partialorder %v990, 8.507059e+37
    %v992 = vand.u32 %v913, 2147483648
    %v993 = vor.u32 1.1754944e-38, %v992
    %v994 = vsel %vm991, %v993, %v989
    %v995 = vmul.f32 1.0, %v994
    %v996 = vrcp.pop %v914
    %v997 = vmul.f32 %v914, %v996
    %v998 = vsub.f32 1.0, %v997
    %v999 = vmul.f32 %v996, %v998
    %v1000 = vadd.f32 %v996, %v999
    %vm1001 = vweird.f32 %v914
    %vm1002 = vweird.f32 %v996
    %vm1003 = vmor %vm1001, %vm1002
    %v1004 = vsel %vm1003, %v996, %v1000
    %v1005 = vand.u32 2147483647, %v914
    %vm1006 = vcmp.eq.f32.partialorder %v1005, 8.507059e+37
    %v1007 = vand.u32 %v914, 2147483648
    %v1008 = vor.u32 1.1754944e-38, %v1007
    %v1009 = vsel %vm1006, %v1008, %v1004
    %v1010 = vmul.f32 1.0, %v1009
    %v1011 = vrcp.pop %v915
    %v1012 = vmul.f32 %v915, %v1011
    %v1013 = vsub.f32 1.0, %v1012
    %v1014 = vmul.f32 %v1011, %v1013
    %v1015 = vadd.f32 %v1011, %v1014
    %vm1016 = vweird.f32 %v915
    %vm1017 = vweird.f32 %v1011
    %vm1018 = vmor %vm1016, %vm1017
    %v1019 = vsel %vm1018, %v1011, %v1015
    %v1020 = vand.u32 2147483647, %v915
    %vm1021 = vcmp.eq.f32.partialorder %v1020, 8.507059e+37
    %v1022 = vand.u32 %v915, 2147483648
    %v1023 = vor.u32 1.1754944e-38, %v1022
    %v1024 = vsel %vm1021, %v1023, %v1019
    %v1025 = vmul.f32 1.0, %v1024
    %v1026 = vrcp.pop %v916
    %v1027 = vmul.f32 %v916, %v1026
    %v1028 = vsub.f32 1.0, %v1027
    %v1029 = vmul.f32 %v1026, %v1028
    %v1030 = vadd.f32 %v1026, %v1029
    %vm1031 = vweird.f32 %v916
    %vm1032 = vweird.f32 %v1026
    %vm1033 = vmor %vm1031, %vm1032
    %v1034 = vsel %vm1033, %v1026, %v1030
    %v1035 = vand.u32 2147483647, %v916
    %vm1036 = vcmp.eq.f32.partialorder %v1035, 8.507059e+37
    %v1037 = vand.u32 %v916, 2147483648
    %v1038 = vor.u32 1.1754944e-38, %v1037
    %v1039 = vsel %vm1036, %v1038, %v1034
    %v1040 = vmul.f32 1.0, %v1039
    %v1041 = vrcp.pop %v917
    %v1042 = vmul.f32 %v917, %v1041
    %v1043 = vsub.f32 1.0, %v1042
    %v1044 = vmul.f32 %v1041, %v1043
    %v1045 = vadd.f32 %v1041, %v1044
    %vm1046 = vweird.f32 %v917
    %vm1047 = vweird.f32 %v1041
    %vm1048 = vmor %vm1046, %vm1047
    %v1049 = vsel %vm1048, %v1041, %v1045
    %v1050 = vand.u32 2147483647, %v917
    %vm1051 = vcmp.eq.f32.partialorder %v1050, 8.507059e+37
    %v1052 = vand.u32 %v917, 2147483648
    %v1053 = vor.u32 1.1754944e-38, %v1052
    %v1054 = vsel %vm1051, %v1053, %v1049
    %v1055 = vmul.f32 1.0, %v1054
    %v1056 = vrcp.pop %v918
    %v1057 = vmul.f32 %v918, %v1056
    %v1058 = vsub.f32 1.0, %v1057
    %v1059 = vmul.f32 %v1056, %v1058
    %v1060 = vadd.f32 %v1056, %v1059
    %vm1061 = vweird.f32 %v918
    %vm1062 = vweird.f32 %v1056
    %vm1063 = vmor %vm1061, %vm1062
    %v1064 = vsel %vm1063, %v1056, %v1060
    %v1065 = vand.u32 2147483647, %v918
    %vm1066 = vcmp.eq.f32.partialorder %v1065, 8.507059e+37
    %v1067 = vand.u32 %v918, 2147483648
    %v1068 = vor.u32 1.1754944e-38, %v1067
    %v1069 = vsel %vm1066, %v1068, %v1064
    %v1070 = vmul.f32 1.0, %v1069
    %v1071 = vrcp.pop %v919
    %v1072 = vmul.f32 %v919, %v1071
    %v1073 = vsub.f32 1.0, %v1072
    %v1074 = vmul.f32 %v1071, %v1073
    %v1075 = vadd.f32 %v1071, %v1074
    %vm1076 = vweird.f32 %v919
    %vm1077 = vweird.f32 %v1071
    %vm1078 = vmor %vm1076, %vm1077
    %v1079 = vsel %vm1078, %v1071, %v1075
    %v1080 = vand.u32 2147483647, %v919
    %vm1081 = vcmp.eq.f32.partialorder %v1080, 8.507059e+37
    %v1082 = vand.u32 %v919, 2147483648
    %v1083 = vor.u32 1.1754944e-38, %v1082
    %v1084 = vsel %vm1081, %v1083, %v1079
    %v1085 = vmul.f32 1.0, %v1084
    %v1086 = vrcp.pop %v920
    %v1087 = vmul.f32 %v920, %v1086
    %v1088 = vsub.f32 1.0, %v1087
    %v1089 = vmul.f32 %v1086, %v1088
    %v1090 = vadd.f32 %v1086, %v1089
    %vm1091 = vweird.f32 %v920
    %vm1092 = vweird.f32 %v1086
    %vm1093 = vmor %vm1091, %vm1092
    %v1094 = vsel %vm1093, %v1086, %v1090
    %v1095 = vand.u32 2147483647, %v920
    %vm1096 = vcmp.eq.f32.partialorder %v1095, 8.507059e+37
    %v1097 = vand.u32 %v920, 2147483648
    %v1098 = vor.u32 1.1754944e-38, %v1097
    %v1099 = vsel %vm1096, %v1098, %v1094
    %v1100 = vmul.f32 1.0, %v1099
    %v1101 = vtanh.pop %v869
    %v1102 = vtanh.pop %v870
    %v1103 = vtanh.pop %v871
    %v1104 = vtanh.pop %v872
    %v1105 = vmul.f32 %v995, %v384
    %v1106 = vmul.f32 %v1010, %v385
    %v1107 = vmul.f32 %v1025, %v386
    %v1108 = vmul.f32 %v1040, %v387
    %v1109 = vmul.f32 %v935, %v1101
    %v1110 = vmul.f32 %v950, %v1102
    %v1111 = vmul.f32 %v965, %v1103
    %v1112 = vmul.f32 %v980, %v1104
    %v1113 = vadd.f32 %v1105, %v1109
    %v1114 = vadd.f32 %v1106, %v1110
    %v1115 = vadd.f32 %v1107, %v1111
    %v1116 = vadd.f32 %v1108, %v1112
    %v1117 = vtanh.pop %v1113
    %v1118 = vtanh.pop %v1114
    %v1119 = vtanh.pop %v1115
    %v1120 = vtanh.pop %v1116
    %v1121 = vmul.f32 %v1055, %v1117
    %v1122 = vmul.f32 %v1070, %v1118
    %v1123 = vmul.f32 %v1085, %v1119
    %v1124 = vmul.f32 %v1100, %v1120
    %1126 = vset.pattern.permute.xlu0 0
    %1127 = vperm.xlu0 %1126, %v396
    %v1128 = vpop.permute.xlu0 %1127
    %1131 = vset.pattern.permute.xlu0 0
    %1132 = vperm.xlu0 %1131, %v397
    %v1133 = vpop.permute.xlu0 %1132
    %1136 = vset.pattern.permute.xlu0 0
    %1137 = vperm.xlu0 %1136, %v398
    %v1138 = vpop.permute.xlu0 %1137
    %1141 = vset.pattern.permute.xlu0 0
    %1142 = vperm.xlu0 %1141, %v399
    %v1143 = vpop.permute.xlu0 %1142
    %v1145 = vmul.f32 %v1121, %v1128
    %v1146 = vmul.f32 %v1122, %v1133
    %v1147 = vmul.f32 %v1123, %v1138
    %v1148 = vmul.f32 %v1124, %v1143
    %v1149 = vadd.f32 %v1145, %v1146
    %v1150 = vadd.f32 %v1149, %v1147
    %v1151 = vadd.f32 %v1150, %v1148
    %v1152 = vrot.slane %v1151, 4
    %v1153 = vadd.f32 %v1151, %v1152
    %v1154 = vrot.slane %v1153, 2
    %v1155 = vadd.f32 %v1153, %v1154
    %v1156 = vrot.slane %v1155, 1
    %v1157 = vadd.f32 %v1155, %v1156
    %1158 = vmatpush.msra.mxu0 %v51
    %1159 = vmatpush.msra.mxu0 %v50
    %1160 = vmatpush.msra.mxu0 %v49
    %1161 = vmatpush.msra.mxu0 %v48
    %1162 = vmatpush.msra.mxu0 %v47
    %1163 = vmatpush.msra.mxu0 %v46
    %1164 = vmatpush.msra.mxu0 %v45
    %1165 = vmatpush.msra.mxu0 %v44
    %1166 = vmatpush.msra.mxu0 %v43
    %1167 = vmatpush.msra.mxu0 %v42
    %1168 = vmatpush.msra.mxu0 %v41
    %1169 = vmatpush.msra.mxu0 %v40
    %1170 = vmatpush.msra.mxu0 %v39
    %1171 = vmatpush.msra.mxu0 %v38
    %1172 = vmatpush.msra.mxu0 %v37
    %1173 = vmatpush.msra.mxu0 %v36
    %1174 = vmatmul.f32.gmra.mxu0 %v1121
    %v1175 = vpop.f32.mrf.mxu0
    %v1176 = vadd.f32 0.0, %v1175
    %1177 = vmatmul.f32.gmra.mxu0 %v1122
    %v1178 = vpop.f32.mrf.mxu0
    %v1179 = vadd.f32 0.0, %v1178
    %1180 = vmatmul.f32.gmra.mxu0 %v1123
    %v1181 = vpop.f32.mrf.mxu0
    %v1182 = vadd.f32 0.0, %v1181
    %1183 = vmatmul.f32.gmra.mxu0 %v1124
    %v1184 = vpop.f32.mrf.mxu0
    %v1185 = vadd.f32 0.0, %v1184
    %1186 = vdwg.mxu0
    %s1187 = scalar_lea.vmem %s7, 32
    %v1188 = vld [vmem:[%s1187] sm:$0xff]
    %v1189 = vld [vmem:[%s1187 + $0x8] sm:$0xff]
    %v1190 = vld [vmem:[%s1187 + $0x10] sm:$0xff]
    %v1191 = vld [vmem:[%s1187 + $0x18] sm:$0xff]
    %s1192 = scalar_lea.vmem %s8, 32
    %v1193 = vld [vmem:[%s1192] sm:$0xff]
    %v1194 = vld [vmem:[%s1192 + $0x8] sm:$0xff]
    %v1195 = vld [vmem:[%s1192 + $0x10] sm:$0xff]
    %v1196 = vld [vmem:[%s1192 + $0x18] sm:$0xff]
    %1198 = vset.pattern.permute.xlu0 0
    %1199 = vperm.xlu0 %1198, %v1193
    %v1200 = vpop.permute.xlu0 %1199
    %1203 = vset.pattern.permute.xlu0 0
    %1204 = vperm.xlu0 %1203, %v1194
    %v1205 = vpop.permute.xlu0 %1204
    %1208 = vset.pattern.permute.xlu0 0
    %1209 = vperm.xlu0 %1208, %v1195
    %v1210 = vpop.permute.xlu0 %1209
    %1213 = vset.pattern.permute.xlu0 0
    %1214 = vperm.xlu0 %1213, %v1196
    %v1215 = vpop.permute.xlu0 %1214
    %v1218 = vsel %vm457, %v1188, 0
    %v1221 = vsel %vm457, %v1189, 0
    %v1224 = vsel %vm457, %v1190, 0
    %v1227 = vsel %vm457, %v1191, 0
    %1229 = vmatpush.msra.mxu0 0.0
    %1230 = vmatpush.msra.mxu0 0.0
    %1231 = vmatpush.msra.mxu0 0.0
    %1232 = vmatpush.msra.mxu0 0.0
    %1233 = vmatpush.msra.mxu0 0.0
    %1234 = vmatpush.msra.mxu0 0.0
    %1235 = vmatpush.msra.mxu0 0.0
    %1236 = vmatpush.msra.mxu0 0.0
    %1237 = vmatpush.msra.mxu0 0.0
    %1238 = vmatpush.msra.mxu0 0.0
    %1239 = vmatpush.msra.mxu0 0.0
    %1240 = vmatpush.msra.mxu0 0.0
    %1241 = vmatpush.msra.mxu0 %v1185
    %1242 = vmatpush.msra.mxu0 %v1182
    %1243 = vmatpush.msra.mxu0 %v1179
    %1244 = vmatpush.msra.mxu0 %v1176
    %1245 = vmatmul.f32.gmra.mxu0 %v1218
    %v1246 = vpop.f32.mrf.mxu0
    %v1247 = vadd.f32 %v1200, %v1246
    %1248 = vmatmul.f32.gmra.mxu0 %v1221
    %v1249 = vpop.f32.mrf.mxu0
    %v1250 = vadd.f32 %v1205, %v1249
    %1251 = vmatmul.f32.gmra.mxu0 %v1224
    %v1252 = vpop.f32.mrf.mxu0
    %v1253 = vadd.f32 %v1210, %v1252
    %1254 = vmatmul.f32.gmra.mxu0 %v1227
    %v1255 = vpop.f32.mrf.mxu0
    %v1256 = vadd.f32 %v1215, %v1255
    %1257 = vdwg.mxu0
    %v1258 = vmax.f32 %v1247, 0.0
    %v1259 = vmax.f32 %v1250, 0.0
    %v1260 = vmax.f32 %v1253, 0.0
    %v1261 = vmax.f32 %v1256, 0.0
    %s1262 = scalar_lea.vmem %s4, 128
    %v1263 = vld [vmem:[%s1262] sm:$0xff]
    %v1264 = vld [vmem:[%s1262 + $0x8] sm:$0xff]
    %v1265 = vld [vmem:[%s1262 + $0x10] sm:$0xff]
    %v1266 = vld [vmem:[%s1262 + $0x18] sm:$0xff]
    %v1267 = vld [vmem:[%s1262 + $0x20] sm:$0xff]
    %v1268 = vld [vmem:[%s1262 + $0x28] sm:$0xff]
    %v1269 = vld [vmem:[%s1262 + $0x30] sm:$0xff]
    %v1270 = vld [vmem:[%s1262 + $0x38] sm:$0xff]
    %v1271 = vld [vmem:[%s1262 + $0x40] sm:$0xff]
    %v1272 = vld [vmem:[%s1262 + $0x48] sm:$0xff]
    %v1273 = vld [vmem:[%s1262 + $0x50] sm:$0xff]
    %v1274 = vld [vmem:[%s1262 + $0x58] sm:$0xff]
    %v1275 = vld [vmem:[%s1262 + $0x60] sm:$0xff]
    %v1276 = vld [vmem:[%s1262 + $0x68] sm:$0xff]
    %v1277 = vld [vmem:[%s1262 + $0x70] sm:$0xff]
    %v1278 = vld [vmem:[%s1262 + $0x78] sm:$0xff]
    %s1279 = scalar_lea.vmem %s5, 128
    %v1280 = vld [vmem:[%s1279] sm:$0xff]
    %v1281 = vld [vmem:[%s1279 + $0x8] sm:$0xff]
    %v1282 = vld [vmem:[%s1279 + $0x10] sm:$0xff]
    %v1283 = vld [vmem:[%s1279 + $0x18] sm:$0xff]
    %v1284 = vld [vmem:[%s1279 + $0x20] sm:$0xff]
    %v1285 = vld [vmem:[%s1279 + $0x28] sm:$0xff]
    %v1286 = vld [vmem:[%s1279 + $0x30] sm:$0xff]
    %v1287 = vld [vmem:[%s1279 + $0x38] sm:$0xff]
    %v1288 = vld [vmem:[%s1279 + $0x40] sm:$0xff]
    %v1289 = vld [vmem:[%s1279 + $0x48] sm:$0xff]
    %v1290 = vld [vmem:[%s1279 + $0x50] sm:$0xff]
    %v1291 = vld [vmem:[%s1279 + $0x58] sm:$0xff]
    %v1292 = vld [vmem:[%s1279 + $0x60] sm:$0xff]
    %v1293 = vld [vmem:[%s1279 + $0x68] sm:$0xff]
    %v1294 = vld [vmem:[%s1279 + $0x70] sm:$0xff]
    %v1295 = vld [vmem:[%s1279 + $0x78] sm:$0xff]
    %v1297 = vsel %vm457, %v1280, 0
    %v1300 = vsel %vm457, %v1281, 0
    %v1303 = vsel %vm457, %v1282, 0
    %v1306 = vsel %vm457, %v1283, 0
    %v1309 = vsel %vm457, %v1284, 0
    %v1312 = vsel %vm457, %v1285, 0
    %v1315 = vsel %vm457, %v1286, 0
    %v1318 = vsel %vm457, %v1287, 0
    %v1321 = vsel %vm457, %v1288, 0
    %v1324 = vsel %vm457, %v1289, 0
    %v1327 = vsel %vm457, %v1290, 0
    %v1330 = vsel %vm457, %v1291, 0
    %v1333 = vsel %vm457, %v1292, 0
    %v1336 = vsel %vm457, %v1293, 0
    %v1339 = vsel %vm457, %v1294, 0
    %v1342 = vsel %vm457, %v1295, 0
    %1344 = vmatpush.msra.mxu0 0.0
    %1345 = vmatpush.msra.mxu0 0.0
    %1346 = vmatpush.msra.mxu0 0.0
    %1347 = vmatpush.msra.mxu0 0.0
    %1348 = vmatpush.msra.mxu0 0.0
    %1349 = vmatpush.msra.mxu0 0.0
    %1350 = vmatpush.msra.mxu0 0.0
    %1351 = vmatpush.msra.mxu0 0.0
    %1352 = vmatpush.msra.mxu0 0.0
    %1353 = vmatpush.msra.mxu0 0.0
    %1354 = vmatpush.msra.mxu0 0.0
    %1355 = vmatpush.msra.mxu0 0.0
    %1356 = vmatpush.msra.mxu0 %v1124
    %1357 = vmatpush.msra.mxu0 %v1123
    %1358 = vmatpush.msra.mxu0 %v1122
    %1359 = vmatpush.msra.mxu0 %v1121
    %1360 = vmatmul.f32.gmra.mxu0 %v1297
    %v1361 = vpop.f32.mrf.mxu0
    %v1362 = vadd.f32 0.0, %v1361
    %1363 = vmatmul.f32.gmra.mxu0 %v1300
    %v1364 = vpop.f32.mrf.mxu0
    %v1365 = vadd.f32 0.0, %v1364
    %1366 = vmatmul.f32.gmra.mxu0 %v1303
    %v1367 = vpop.f32.mrf.mxu0
    %v1368 = vadd.f32 0.0, %v1367
    %1369 = vmatmul.f32.gmra.mxu0 %v1306
    %v1370 = vpop.f32.mrf.mxu0
    %v1371 = vadd.f32 0.0, %v1370
    %1372 = vmatmul.f32.gmra.mxu0 %v1309
    %v1373 = vpop.f32.mrf.mxu0
    %v1374 = vadd.f32 0.0, %v1373
    %1375 = vmatmul.f32.gmra.mxu0 %v1312
    %v1376 = vpop.f32.mrf.mxu0
    %v1377 = vadd.f32 0.0, %v1376
    %1378 = vmatmul.f32.gmra.mxu0 %v1315
    %v1379 = vpop.f32.mrf.mxu0
    %v1380 = vadd.f32 0.0, %v1379
    %1381 = vmatmul.f32.gmra.mxu0 %v1318
    %v1382 = vpop.f32.mrf.mxu0
    %v1383 = vadd.f32 0.0, %v1382
    %1384 = vmatmul.f32.gmra.mxu0 %v1321
    %v1385 = vpop.f32.mrf.mxu0
    %v1386 = vadd.f32 0.0, %v1385
    %1387 = vmatmul.f32.gmra.mxu0 %v1324
    %v1388 = vpop.f32.mrf.mxu0
    %v1389 = vadd.f32 0.0, %v1388
    %1390 = vmatmul.f32.gmra.mxu0 %v1327
    %v1391 = vpop.f32.mrf.mxu0
    %v1392 = vadd.f32 0.0, %v1391
    %1393 = vmatmul.f32.gmra.mxu0 %v1330
    %v1394 = vpop.f32.mrf.mxu0
    %v1395 = vadd.f32 0.0, %v1394
    %1396 = vmatmul.f32.gmra.mxu0 %v1333
    %v1397 = vpop.f32.mrf.mxu0
    %v1398 = vadd.f32 0.0, %v1397
    %1399 = vmatmul.f32.gmra.mxu0 %v1336
    %v1400 = vpop.f32.mrf.mxu0
    %v1401 = vadd.f32 0.0, %v1400
    %1402 = vmatmul.f32.gmra.mxu0 %v1339
    %v1403 = vpop.f32.mrf.mxu0
    %v1404 = vadd.f32 0.0, %v1403
    %1405 = vmatmul.f32.gmra.mxu0 %v1342
    %v1406 = vpop.f32.mrf.mxu0
    %v1407 = vadd.f32 0.0, %v1406
    %1408 = vdwg.mxu0
    %v1410 = vsel %vm457, %v1263, 0
    %v1413 = vsel %vm457, %v1264, 0
    %v1416 = vsel %vm457, %v1265, 0
    %v1419 = vsel %vm457, %v1266, 0
    %v1422 = vsel %vm457, %v1267, 0
    %v1425 = vsel %vm457, %v1268, 0
    %v1428 = vsel %vm457, %v1269, 0
    %v1431 = vsel %vm457, %v1270, 0
    %v1434 = vsel %vm457, %v1271, 0
    %v1437 = vsel %vm457, %v1272, 0
    %v1440 = vsel %vm457, %v1273, 0
    %v1443 = vsel %vm457, %v1274, 0
    %v1446 = vsel %vm457, %v1275, 0
    %v1449 = vsel %vm457, %v1276, 0
    %v1452 = vsel %vm457, %v1277, 0
    %v1455 = vsel %vm457, %v1278, 0
    %1457 = vmatpush.msra.mxu0 0.0
    %1458 = vmatpush.msra.mxu0 0.0
    %1459 = vmatpush.msra.mxu0 0.0
    %1460 = vmatpush.msra.mxu0 0.0
    %1461 = vmatpush.msra.mxu0 0.0
    %1462 = vmatpush.msra.mxu0 0.0
    %1463 = vmatpush.msra.mxu0 0.0
    %1464 = vmatpush.msra.mxu0 0.0
    %1465 = vmatpush.msra.mxu0 0.0
    %1466 = vmatpush.msra.mxu0 0.0
    %1467 = vmatpush.msra.mxu0 0.0
    %1468 = vmatpush.msra.mxu0 0.0
    %1469 = vmatpush.msra.mxu0 %v1261
    %1470 = vmatpush.msra.mxu0 %v1260
    %1471 = vmatpush.msra.mxu0 %v1259
    %1472 = vmatpush.msra.mxu0 %v1258
    %1473 = vmatmul.f32.gmra.mxu0 %v1410
    %v1474 = vpop.f32.mrf.mxu0
    %v1475 = vadd.f32 %v1362, %v1474
    %1476 = vmatmul.f32.gmra.mxu0 %v1413
    %v1477 = vpop.f32.mrf.mxu0
    %v1478 = vadd.f32 %v1365, %v1477
    %1479 = vmatmul.f32.gmra.mxu0 %v1416
    %v1480 = vpop.f32.mrf.mxu0
    %v1481 = vadd.f32 %v1368, %v1480
    %1482 = vmatmul.f32.gmra.mxu0 %v1419
    %v1483 = vpop.f32.mrf.mxu0
    %v1484 = vadd.f32 %v1371, %v1483
    %1485 = vmatmul.f32.gmra.mxu0 %v1422
    %v1486 = vpop.f32.mrf.mxu0
    %v1487 = vadd.f32 %v1374, %v1486
    %1488 = vmatmul.f32.gmra.mxu0 %v1425
    %v1489 = vpop.f32.mrf.mxu0
    %v1490 = vadd.f32 %v1377, %v1489
    %1491 = vmatmul.f32.gmra.mxu0 %v1428
    %v1492 = vpop.f32.mrf.mxu0
    %v1493 = vadd.f32 %v1380, %v1492
    %1494 = vmatmul.f32.gmra.mxu0 %v1431
    %v1495 = vpop.f32.mrf.mxu0
    %v1496 = vadd.f32 %v1383, %v1495
    %1497 = vmatmul.f32.gmra.mxu0 %v1434
    %v1498 = vpop.f32.mrf.mxu0
    %v1499 = vadd.f32 %v1386, %v1498
    %1500 = vmatmul.f32.gmra.mxu0 %v1437
    %v1501 = vpop.f32.mrf.mxu0
    %v1502 = vadd.f32 %v1389, %v1501
    %1503 = vmatmul.f32.gmra.mxu0 %v1440
    %v1504 = vpop.f32.mrf.mxu0
    %v1505 = vadd.f32 %v1392, %v1504
    %1506 = vmatmul.f32.gmra.mxu0 %v1443
    %v1507 = vpop.f32.mrf.mxu0
    %v1508 = vadd.f32 %v1395, %v1507
    %1509 = vmatmul.f32.gmra.mxu0 %v1446
    %v1510 = vpop.f32.mrf.mxu0
    %v1511 = vadd.f32 %v1398, %v1510
    %1512 = vmatmul.f32.gmra.mxu0 %v1449
    %v1513 = vpop.f32.mrf.mxu0
    %v1514 = vadd.f32 %v1401, %v1513
    %1515 = vmatmul.f32.gmra.mxu0 %v1452
    %v1516 = vpop.f32.mrf.mxu0
    %v1517 = vadd.f32 %v1404, %v1516
    %1518 = vmatmul.f32.gmra.mxu0 %v1455
    %v1519 = vpop.f32.mrf.mxu0
    %v1520 = vadd.f32 %v1407, %v1519
    %1521 = vdwg.mxu0
    %s1522 = scalar_lea.vmem %s6, 128
    %v1523 = vld [vmem:[%s1522] sm:$0xff]
    %v1524 = vld [vmem:[%s1522 + $0x8] sm:$0xff]
    %v1525 = vld [vmem:[%s1522 + $0x10] sm:$0xff]
    %v1526 = vld [vmem:[%s1522 + $0x18] sm:$0xff]
    %v1527 = vld [vmem:[%s1522 + $0x20] sm:$0xff]
    %v1528 = vld [vmem:[%s1522 + $0x28] sm:$0xff]
    %v1529 = vld [vmem:[%s1522 + $0x30] sm:$0xff]
    %v1530 = vld [vmem:[%s1522 + $0x38] sm:$0xff]
    %v1531 = vld [vmem:[%s1522 + $0x40] sm:$0xff]
    %v1532 = vld [vmem:[%s1522 + $0x48] sm:$0xff]
    %v1533 = vld [vmem:[%s1522 + $0x50] sm:$0xff]
    %v1534 = vld [vmem:[%s1522 + $0x58] sm:$0xff]
    %v1535 = vld [vmem:[%s1522 + $0x60] sm:$0xff]
    %v1536 = vld [vmem:[%s1522 + $0x68] sm:$0xff]
    %v1537 = vld [vmem:[%s1522 + $0x70] sm:$0xff]
    %v1538 = vld [vmem:[%s1522 + $0x78] sm:$0xff]
    %1540 = vset.pattern.permute.xlu0 0
    %1541 = vperm.xlu0 %1540, %v1523
    %v1542 = vpop.permute.xlu0 %1541
    %1545 = vset.pattern.permute.xlu0 0
    %1546 = vperm.xlu0 %1545, %v1524
    %v1547 = vpop.permute.xlu0 %1546
    %1550 = vset.pattern.permute.xlu0 0
    %1551 = vperm.xlu0 %1550, %v1525
    %v1552 = vpop.permute.xlu0 %1551
    %1555 = vset.pattern.permute.xlu0 0
    %1556 = vperm.xlu0 %1555, %v1526
    %v1557 = vpop.permute.xlu0 %1556
    %1560 = vset.pattern.permute.xlu0 0
    %1561 = vperm.xlu0 %1560, %v1527
    %v1562 = vpop.permute.xlu0 %1561
    %1565 = vset.pattern.permute.xlu0 0
    %1566 = vperm.xlu0 %1565, %v1528
    %v1567 = vpop.permute.xlu0 %1566
    %1570 = vset.pattern.permute.xlu0 0
    %1571 = vperm.xlu0 %1570, %v1529
    %v1572 = vpop.permute.xlu0 %1571
    %1575 = vset.pattern.permute.xlu0 0
    %1576 = vperm.xlu0 %1575, %v1530
    %v1577 = vpop.permute.xlu0 %1576
    %1580 = vset.pattern.permute.xlu0 0
    %1581 = vperm.xlu0 %1580, %v1531
    %v1582 = vpop.permute.xlu0 %1581
    %1585 = vset.pattern.permute.xlu0 0
    %1586 = vperm.xlu0 %1585, %v1532
    %v1587 = vpop.permute.xlu0 %1586
    %1590 = vset.pattern.permute.xlu0 0
    %1591 = vperm.xlu0 %1590, %v1533
    %v1592 = vpop.permute.xlu0 %1591
    %1595 = vset.pattern.permute.xlu0 0
    %1596 = vperm.xlu0 %1595, %v1534
    %v1597 = vpop.permute.xlu0 %1596
    %1600 = vset.pattern.permute.xlu0 0
    %1601 = vperm.xlu0 %1600, %v1535
    %v1602 = vpop.permute.xlu0 %1601
    %1605 = vset.pattern.permute.xlu0 0
    %1606 = vperm.xlu0 %1605, %v1536
    %v1607 = vpop.permute.xlu0 %1606
    %1610 = vset.pattern.permute.xlu0 0
    %1611 = vperm.xlu0 %1610, %v1537
    %v1612 = vpop.permute.xlu0 %1611
    %1615 = vset.pattern.permute.xlu0 0
    %1616 = vperm.xlu0 %1615, %v1538
    %v1617 = vpop.permute.xlu0 %1616
    %v1619 = vadd.f32 %v1475, %v1542
    %v1620 = vadd.f32 %v1478, %v1547
    %v1621 = vadd.f32 %v1481, %v1552
    %v1622 = vadd.f32 %v1484, %v1557
    %v1623 = vadd.f32 %v1487, %v1562
    %v1624 = vadd.f32 %v1490, %v1567
    %v1625 = vadd.f32 %v1493, %v1572
    %v1626 = vadd.f32 %v1496, %v1577
    %v1627 = vadd.f32 %v1499, %v1582
    %v1628 = vadd.f32 %v1502, %v1587
    %v1629 = vadd.f32 %v1505, %v1592
    %v1630 = vadd.f32 %v1508, %v1597
    %v1631 = vadd.f32 %v1511, %v1602
    %v1632 = vadd.f32 %v1514, %v1607
    %v1633 = vadd.f32 %v1517, %v1612
    %v1634 = vadd.f32 %v1520, %v1617
    %v1635 = vxor.u32 %v1619, 2147483648
    %v1636 = vxor.u32 %v1620, 2147483648
    %v1637 = vxor.u32 %v1621, 2147483648
    %v1638 = vxor.u32 %v1622, 2147483648
    %v1639 = vxor.u32 %v1623, 2147483648
    %v1640 = vxor.u32 %v1624, 2147483648
    %v1641 = vxor.u32 %v1625, 2147483648
    %v1642 = vxor.u32 %v1626, 2147483648
    %v1643 = vxor.u32 %v1627, 2147483648
    %v1644 = vxor.u32 %v1628, 2147483648
    %v1645 = vxor.u32 %v1629, 2147483648
    %v1646 = vxor.u32 %v1630, 2147483648
    %v1647 = vmul.f32 %v1635, 1.442695
    %v1648 = vpow.pop %v1647
    %v1649 = vmul.f32 %v1636, 1.442695
    %v1650 = vpow.pop %v1649
    %v1651 = vmul.f32 %v1637, 1.442695
    %v1652 = vpow.pop %v1651
    %v1653 = vmul.f32 %v1638, 1.442695
    %v1654 = vpow.pop %v1653
    %v1655 = vmul.f32 %v1639, 1.442695
    %v1656 = vpow.pop %v1655
    %v1657 = vmul.f32 %v1640, 1.442695
    %v1658 = vpow.pop %v1657
    %v1659 = vmul.f32 %v1641, 1.442695
    %v1660 = vpow.pop %v1659
    %v1661 = vmul.f32 %v1642, 1.442695
    %v1662 = vpow.pop %v1661
    %v1663 = vmul.f32 %v1643, 1.442695
    %v1664 = vpow.pop %v1663
    %v1665 = vmul.f32 %v1644, 1.442695
    %v1666 = vpow.pop %v1665
    %v1667 = vmul.f32 %v1645, 1.442695
    %v1668 = vpow.pop %v1667
    %v1669 = vmul.f32 %v1646, 1.442695
    %v1670 = vpow.pop %v1669
    %v1671 = vadd.f32 %v1648, 1.0
    %v1672 = vadd.f32 %v1650, 1.0
    %v1673 = vadd.f32 %v1652, 1.0
    %v1674 = vadd.f32 %v1654, 1.0
    %v1675 = vadd.f32 %v1656, 1.0
    %v1676 = vadd.f32 %v1658, 1.0
    %v1677 = vadd.f32 %v1660, 1.0
    %v1678 = vadd.f32 %v1662, 1.0
    %v1679 = vadd.f32 %v1664, 1.0
    %v1680 = vadd.f32 %v1666, 1.0
    %v1681 = vadd.f32 %v1668, 1.0
    %v1682 = vadd.f32 %v1670, 1.0
    %v1683 = vrcp.pop %v1671
    %v1684 = vmul.f32 %v1671, %v1683
    %v1685 = vsub.f32 1.0, %v1684
    %v1686 = vmul.f32 %v1683, %v1685
    %v1687 = vadd.f32 %v1683, %v1686
    %vm1688 = vweird.f32 %v1671
    %vm1689 = vweird.f32 %v1683
    %vm1690 = vmor %vm1688, %vm1689
    %v1691 = vsel %vm1690, %v1683, %v1687
    %v1692 = vand.u32 2147483647, %v1671
    %vm1693 = vcmp.eq.f32.partialorder %v1692, 8.507059e+37
    %v1694 = vand.u32 %v1671, 2147483648
    %v1695 = vor.u32 1.1754944e-38, %v1694
    %v1696 = vsel %vm1693, %v1695, %v1691
    %v1697 = vmul.f32 1.0, %v1696
    %v1698 = vrcp.pop %v1672
    %v1699 = vmul.f32 %v1672, %v1698
    %v1700 = vsub.f32 1.0, %v1699
    %v1701 = vmul.f32 %v1698, %v1700
    %v1702 = vadd.f32 %v1698, %v1701
    %vm1703 = vweird.f32 %v1672
    %vm1704 = vweird.f32 %v1698
    %vm1705 = vmor %vm1703, %vm1704
    %v1706 = vsel %vm1705, %v1698, %v1702
    %v1707 = vand.u32 2147483647, %v1672
    %vm1708 = vcmp.eq.f32.partialorder %v1707, 8.507059e+37
    %v1709 = vand.u32 %v1672, 2147483648
    %v1710 = vor.u32 1.1754944e-38, %v1709
    %v1711 = vsel %vm1708, %v1710, %v1706
    %v1712 = vmul.f32 1.0, %v1711
    %v1713 = vrcp.pop %v1673
    %v1714 = vmul.f32 %v1673, %v1713
    %v1715 = vsub.f32 1.0, %v1714
    %v1716 = vmul.f32 %v1713, %v1715
    %v1717 = vadd.f32 %v1713, %v1716
    %vm1718 = vweird.f32 %v1673
    %vm1719 = vweird.f32 %v1713
    %vm1720 = vmor %vm1718, %vm1719
    %v1721 = vsel %vm1720, %v1713, %v1717
    %v1722 = vand.u32 2147483647, %v1673
    %vm1723 = vcmp.eq.f32.partialorder %v1722, 8.507059e+37
    %v1724 = vand.u32 %v1673, 2147483648
    %v1725 = vor.u32 1.1754944e-38, %v1724
    %v1726 = vsel %vm1723, %v1725, %v1721
    %v1727 = vmul.f32 1.0, %v1726
    %v1728 = vrcp.pop %v1674
    %v1729 = vmul.f32 %v1674, %v1728
    %v1730 = vsub.f32 1.0, %v1729
    %v1731 = vmul.f32 %v1728, %v1730
    %v1732 = vadd.f32 %v1728, %v1731
    %vm1733 = vweird.f32 %v1674
    %vm1734 = vweird.f32 %v1728
    %vm1735 = vmor %vm1733, %vm1734
    %v1736 = vsel %vm1735, %v1728, %v1732
    %v1737 = vand.u32 2147483647, %v1674
    %vm1738 = vcmp.eq.f32.partialorder %v1737, 8.507059e+37
    %v1739 = vand.u32 %v1674, 2147483648
    %v1740 = vor.u32 1.1754944e-38, %v1739
    %v1741 = vsel %vm1738, %v1740, %v1736
    %v1742 = vmul.f32 1.0, %v1741
    %v1743 = vrcp.pop %v1675
    %v1744 = vmul.f32 %v1675, %v1743
    %v1745 = vsub.f32 1.0, %v1744
    %v1746 = vmul.f32 %v1743, %v1745
    %v1747 = vadd.f32 %v1743, %v1746
    %vm1748 = vweird.f32 %v1675
    %vm1749 = vweird.f32 %v1743
    %vm1750 = vmor %vm1748, %vm1749
    %v1751 = vsel %vm1750, %v1743, %v1747
    %v1752 = vand.u32 2147483647, %v1675
    %vm1753 = vcmp.eq.f32.partialorder %v1752, 8.507059e+37
    %v1754 = vand.u32 %v1675, 2147483648
    %v1755 = vor.u32 1.1754944e-38, %v1754
    %v1756 = vsel %vm1753, %v1755, %v1751
    %v1757 = vmul.f32 1.0, %v1756
    %v1758 = vrcp.pop %v1676
    %v1759 = vmul.f32 %v1676, %v1758
    %v1760 = vsub.f32 1.0, %v1759
    %v1761 = vmul.f32 %v1758, %v1760
    %v1762 = vadd.f32 %v1758, %v1761
    %vm1763 = vweird.f32 %v1676
    %vm1764 = vweird.f32 %v1758
    %vm1765 = vmor %vm1763, %vm1764
    %v1766 = vsel %vm1765, %v1758, %v1762
    %v1767 = vand.u32 2147483647, %v1676
    %vm1768 = vcmp.eq.f32.partialorder %v1767, 8.507059e+37
    %v1769 = vand.u32 %v1676, 2147483648
    %v1770 = vor.u32 1.1754944e-38, %v1769
    %v1771 = vsel %vm1768, %v1770, %v1766
    %v1772 = vmul.f32 1.0, %v1771
    %v1773 = vrcp.pop %v1677
    %v1774 = vmul.f32 %v1677, %v1773
    %v1775 = vsub.f32 1.0, %v1774
    %v1776 = vmul.f32 %v1773, %v1775
    %v1777 = vadd.f32 %v1773, %v1776
    %vm1778 = vweird.f32 %v1677
    %vm1779 = vweird.f32 %v1773
    %vm1780 = vmor %vm1778, %vm1779
    %v1781 = vsel %vm1780, %v1773, %v1777
    %v1782 = vand.u32 2147483647, %v1677
    %vm1783 = vcmp.eq.f32.partialorder %v1782, 8.507059e+37
    %v1784 = vand.u32 %v1677, 2147483648
    %v1785 = vor.u32 1.1754944e-38, %v1784
    %v1786 = vsel %vm1783, %v1785, %v1781
    %v1787 = vmul.f32 1.0, %v1786
    %v1788 = vrcp.pop %v1678
    %v1789 = vmul.f32 %v1678, %v1788
    %v1790 = vsub.f32 1.0, %v1789
    %v1791 = vmul.f32 %v1788, %v1790
    %v1792 = vadd.f32 %v1788, %v1791
    %vm1793 = vweird.f32 %v1678
    %vm1794 = vweird.f32 %v1788
    %vm1795 = vmor %vm1793, %vm1794
    %v1796 = vsel %vm1795, %v1788, %v1792
    %v1797 = vand.u32 2147483647, %v1678
    %vm1798 = vcmp.eq.f32.partialorder %v1797, 8.507059e+37
    %v1799 = vand.u32 %v1678, 2147483648
    %v1800 = vor.u32 1.1754944e-38, %v1799
    %v1801 = vsel %vm1798, %v1800, %v1796
    %v1802 = vmul.f32 1.0, %v1801
    %v1803 = vrcp.pop %v1679
    %v1804 = vmul.f32 %v1679, %v1803
    %v1805 = vsub.f32 1.0, %v1804
    %v1806 = vmul.f32 %v1803, %v1805
    %v1807 = vadd.f32 %v1803, %v1806
    %vm1808 = vweird.f32 %v1679
    %vm1809 = vweird.f32 %v1803
    %vm1810 = vmor %vm1808, %vm1809
    %v1811 = vsel %vm1810, %v1803, %v1807
    %v1812 = vand.u32 2147483647, %v1679
    %vm1813 = vcmp.eq.f32.partialorder %v1812, 8.507059e+37
    %v1814 = vand.u32 %v1679, 2147483648
    %v1815 = vor.u32 1.1754944e-38, %v1814
    %v1816 = vsel %vm1813, %v1815, %v1811
    %v1817 = vmul.f32 1.0, %v1816
    %v1818 = vrcp.pop %v1680
    %v1819 = vmul.f32 %v1680, %v1818
    %v1820 = vsub.f32 1.0, %v1819
    %v1821 = vmul.f32 %v1818, %v1820
    %v1822 = vadd.f32 %v1818, %v1821
    %vm1823 = vweird.f32 %v1680
    %vm1824 = vweird.f32 %v1818
    %vm1825 = vmor %vm1823, %vm1824
    %v1826 = vsel %vm1825, %v1818, %v1822
    %v1827 = vand.u32 2147483647, %v1680
    %vm1828 = vcmp.eq.f32.partialorder %v1827, 8.507059e+37
    %v1829 = vand.u32 %v1680, 2147483648
    %v1830 = vor.u32 1.1754944e-38, %v1829
    %v1831 = vsel %vm1828, %v1830, %v1826
    %v1832 = vmul.f32 1.0, %v1831
    %v1833 = vrcp.pop %v1681
    %v1834 = vmul.f32 %v1681, %v1833
    %v1835 = vsub.f32 1.0, %v1834
    %v1836 = vmul.f32 %v1833, %v1835
    %v1837 = vadd.f32 %v1833, %v1836
    %vm1838 = vweird.f32 %v1681
    %vm1839 = vweird.f32 %v1833
    %vm1840 = vmor %vm1838, %vm1839
    %v1841 = vsel %vm1840, %v1833, %v1837
    %v1842 = vand.u32 2147483647, %v1681
    %vm1843 = vcmp.eq.f32.partialorder %v1842, 8.507059e+37
    %v1844 = vand.u32 %v1681, 2147483648
    %v1845 = vor.u32 1.1754944e-38, %v1844
    %v1846 = vsel %vm1843, %v1845, %v1841
    %v1847 = vmul.f32 1.0, %v1846
    %v1848 = vrcp.pop %v1682
    %v1849 = vmul.f32 %v1682, %v1848
    %v1850 = vsub.f32 1.0, %v1849
    %v1851 = vmul.f32 %v1848, %v1850
    %v1852 = vadd.f32 %v1848, %v1851
    %vm1853 = vweird.f32 %v1682
    %vm1854 = vweird.f32 %v1848
    %vm1855 = vmor %vm1853, %vm1854
    %v1856 = vsel %vm1855, %v1848, %v1852
    %v1857 = vand.u32 2147483647, %v1682
    %vm1858 = vcmp.eq.f32.partialorder %v1857, 8.507059e+37
    %v1859 = vand.u32 %v1682, 2147483648
    %v1860 = vor.u32 1.1754944e-38, %v1859
    %v1861 = vsel %vm1858, %v1860, %v1856
    %v1862 = vmul.f32 1.0, %v1861
    %v1863 = vtanh.pop %v1631
    %v1864 = vtanh.pop %v1632
    %v1865 = vtanh.pop %v1633
    %v1866 = vtanh.pop %v1634
    %v1867 = vmul.f32 %v1757, %v1113
    %v1868 = vmul.f32 %v1772, %v1114
    %v1869 = vmul.f32 %v1787, %v1115
    %v1870 = vmul.f32 %v1802, %v1116
    %v1871 = vmul.f32 %v1697, %v1863
    %v1872 = vmul.f32 %v1712, %v1864
    %v1873 = vmul.f32 %v1727, %v1865
    %v1874 = vmul.f32 %v1742, %v1866
    %v1875 = vadd.f32 %v1867, %v1871
    %v1876 = vadd.f32 %v1868, %v1872
    %v1877 = vadd.f32 %v1869, %v1873
    %v1878 = vadd.f32 %v1870, %v1874
    %v1879 = vtanh.pop %v1875
    %v1880 = vtanh.pop %v1876
    %v1881 = vtanh.pop %v1877
    %v1882 = vtanh.pop %v1878
    %v1883 = vmul.f32 %v1817, %v1879
    %v1884 = vmul.f32 %v1832, %v1880
    %v1885 = vmul.f32 %v1847, %v1881
    %v1886 = vmul.f32 %v1862, %v1882
    %v1887 = vmul.f32 %v1883, %v1128
    %v1888 = vmul.f32 %v1884, %v1133
    %v1889 = vmul.f32 %v1885, %v1138
    %v1890 = vmul.f32 %v1886, %v1143
    %v1891 = vadd.f32 %v1887, %v1888
    %v1892 = vadd.f32 %v1891, %v1889
    %v1893 = vadd.f32 %v1892, %v1890
    %v1894 = vrot.slane %v1893, 4
    %v1895 = vadd.f32 %v1893, %v1894
    %v1896 = vrot.slane %v1895, 2
    %v1897 = vadd.f32 %v1895, %v1896
    %v1898 = vrot.slane %v1897, 1
    %v1899 = vadd.f32 %v1897, %v1898
    %v1900 = vmax.f32 %v1157, %v1899
    %v1901 = vsub.f32 %v1157, %v1900
    %v1902 = vmul.f32 %v1901, 1.442695
    %v1903 = vpow.pop %v1902
    %v1904 = vsub.f32 %v1899, %v1900
    %v1905 = vmul.f32 %v1904, 1.442695
    %v1906 = vpow.pop %v1905
    %v1907 = vadd.f32 %v1903, %v1906
    %v1908 = vmul.f32 %v1121, %v1903
    %v1909 = vmul.f32 %v1122, %v1903
    %v1910 = vmul.f32 %v1123, %v1903
    %v1911 = vmul.f32 %v1124, %v1903
    %v1912 = vmul.f32 %v1906, %v1883
    %v1913 = vmul.f32 %v1906, %v1884
    %v1914 = vmul.f32 %v1906, %v1885
    %v1915 = vmul.f32 %v1906, %v1886
    %v1916 = vadd.f32 %v1908, %v1912
    %v1917 = vadd.f32 %v1909, %v1913
    %v1918 = vadd.f32 %v1910, %v1914
    %v1919 = vadd.f32 %v1911, %v1915
    %1920 = vmatpush.msra.mxu0 %v51
    %1921 = vmatpush.msra.mxu0 %v50
    %1922 = vmatpush.msra.mxu0 %v49
    %1923 = vmatpush.msra.mxu0 %v48
    %1924 = vmatpush.msra.mxu0 %v47
    %1925 = vmatpush.msra.mxu0 %v46
    %1926 = vmatpush.msra.mxu0 %v45
    %1927 = vmatpush.msra.mxu0 %v44
    %1928 = vmatpush.msra.mxu0 %v43
    %1929 = vmatpush.msra.mxu0 %v42
    %1930 = vmatpush.msra.mxu0 %v41
    %1931 = vmatpush.msra.mxu0 %v40
    %1932 = vmatpush.msra.mxu0 %v39
    %1933 = vmatpush.msra.mxu0 %v38
    %1934 = vmatpush.msra.mxu0 %v37
    %1935 = vmatpush.msra.mxu0 %v36
    %1936 = vmatmul.f32.gmra.mxu0 %v1883
    %v1937 = vpop.f32.mrf.mxu0
    %v1938 = vadd.f32 0.0, %v1937
    %1939 = vmatmul.f32.gmra.mxu0 %v1884
    %v1940 = vpop.f32.mrf.mxu0
    %v1941 = vadd.f32 0.0, %v1940
    %1942 = vmatmul.f32.gmra.mxu0 %v1885
    %v1943 = vpop.f32.mrf.mxu0
    %v1944 = vadd.f32 0.0, %v1943
    %1945 = vmatmul.f32.gmra.mxu0 %v1886
    %v1946 = vpop.f32.mrf.mxu0
    %v1947 = vadd.f32 0.0, %v1946
    %1948 = vdwg.mxu0
    %s1949 = scalar_lea.vmem %s7, 64
    %v1950 = vld [vmem:[%s1949] sm:$0xff]
    %v1951 = vld [vmem:[%s1949 + $0x8] sm:$0xff]
    %v1952 = vld [vmem:[%s1949 + $0x10] sm:$0xff]
    %v1953 = vld [vmem:[%s1949 + $0x18] sm:$0xff]
    %s1954 = scalar_lea.vmem %s8, 64
    %v1955 = vld [vmem:[%s1954] sm:$0xff]
    %v1956 = vld [vmem:[%s1954 + $0x8] sm:$0xff]
    %v1957 = vld [vmem:[%s1954 + $0x10] sm:$0xff]
    %v1958 = vld [vmem:[%s1954 + $0x18] sm:$0xff]
    %1960 = vset.pattern.permute.xlu0 0
    %1961 = vperm.xlu0 %1960, %v1955
    %v1962 = vpop.permute.xlu0 %1961
    %1965 = vset.pattern.permute.xlu0 0
    %1966 = vperm.xlu0 %1965, %v1956
    %v1967 = vpop.permute.xlu0 %1966
    %1970 = vset.pattern.permute.xlu0 0
    %1971 = vperm.xlu0 %1970, %v1957
    %v1972 = vpop.permute.xlu0 %1971
    %1975 = vset.pattern.permute.xlu0 0
    %1976 = vperm.xlu0 %1975, %v1958
    %v1977 = vpop.permute.xlu0 %1976
    %v1980 = vsel %vm457, %v1950, 0
    %v1983 = vsel %vm457, %v1951, 0
    %v1986 = vsel %vm457, %v1952, 0
    %v1989 = vsel %vm457, %v1953, 0
    %1991 = vmatpush.msra.mxu0 0.0
    %1992 = vmatpush.msra.mxu0 0.0
    %1993 = vmatpush.msra.mxu0 0.0
    %1994 = vmatpush.msra.mxu0 0.0
    %1995 = vmatpush.msra.mxu0 0.0
    %1996 = vmatpush.msra.mxu0 0.0
    %1997 = vmatpush.msra.mxu0 0.0
    %1998 = vmatpush.msra.mxu0 0.0
    %1999 = vmatpush.msra.mxu0 0.0
    %2000 = vmatpush.msra.mxu0 0.0
    %2001 = vmatpush.msra.mxu0 0.0
    %2002 = vmatpush.msra.mxu0 0.0
    %2003 = vmatpush.msra.mxu0 %v1947
    %2004 = vmatpush.msra.mxu0 %v1944
    %2005 = vmatpush.msra.mxu0 %v1941
    %2006 = vmatpush.msra.mxu0 %v1938
    %2007 = vmatmul.f32.gmra.mxu0 %v1980
    %v2008 = vpop.f32.mrf.mxu0
    %v2009 = vadd.f32 %v1962, %v2008
    %2010 = vmatmul.f32.gmra.mxu0 %v1983
    %v2011 = vpop.f32.mrf.mxu0
    %v2012 = vadd.f32 %v1967, %v2011
    %2013 = vmatmul.f32.gmra.mxu0 %v1986
    %v2014 = vpop.f32.mrf.mxu0
    %v2015 = vadd.f32 %v1972, %v2014
    %2016 = vmatmul.f32.gmra.mxu0 %v1989
    %v2017 = vpop.f32.mrf.mxu0
    %v2018 = vadd.f32 %v1977, %v2017
    %2019 = vdwg.mxu0
    %v2020 = vmax.f32 %v2009, 0.0
    %v2021 = vmax.f32 %v2012, 0.0
    %v2022 = vmax.f32 %v2015, 0.0
    %v2023 = vmax.f32 %v2018, 0.0
    %s2024 = scalar_lea.vmem %s4, 256
    %v2025 = vld [vmem:[%s2024] sm:$0xff]
    %v2026 = vld [vmem:[%s2024 + $0x8] sm:$0xff]
    %v2027 = vld [vmem:[%s2024 + $0x10] sm:$0xff]
    %v2028 = vld [vmem:[%s2024 + $0x18] sm:$0xff]
    %v2029 = vld [vmem:[%s2024 + $0x20] sm:$0xff]
    %v2030 = vld [vmem:[%s2024 + $0x28] sm:$0xff]
    %v2031 = vld [vmem:[%s2024 + $0x30] sm:$0xff]
    %v2032 = vld [vmem:[%s2024 + $0x38] sm:$0xff]
    %v2033 = vld [vmem:[%s2024 + $0x40] sm:$0xff]
    %v2034 = vld [vmem:[%s2024 + $0x48] sm:$0xff]
    %v2035 = vld [vmem:[%s2024 + $0x50] sm:$0xff]
    %v2036 = vld [vmem:[%s2024 + $0x58] sm:$0xff]
    %v2037 = vld [vmem:[%s2024 + $0x60] sm:$0xff]
    %v2038 = vld [vmem:[%s2024 + $0x68] sm:$0xff]
    %v2039 = vld [vmem:[%s2024 + $0x70] sm:$0xff]
    %v2040 = vld [vmem:[%s2024 + $0x78] sm:$0xff]
    %s2041 = scalar_lea.vmem %s5, 256
    %v2042 = vld [vmem:[%s2041] sm:$0xff]
    %v2043 = vld [vmem:[%s2041 + $0x8] sm:$0xff]
    %v2044 = vld [vmem:[%s2041 + $0x10] sm:$0xff]
    %v2045 = vld [vmem:[%s2041 + $0x18] sm:$0xff]
    %v2046 = vld [vmem:[%s2041 + $0x20] sm:$0xff]
    %v2047 = vld [vmem:[%s2041 + $0x28] sm:$0xff]
    %v2048 = vld [vmem:[%s2041 + $0x30] sm:$0xff]
    %v2049 = vld [vmem:[%s2041 + $0x38] sm:$0xff]
    %v2050 = vld [vmem:[%s2041 + $0x40] sm:$0xff]
    %v2051 = vld [vmem:[%s2041 + $0x48] sm:$0xff]
    %v2052 = vld [vmem:[%s2041 + $0x50] sm:$0xff]
    %v2053 = vld [vmem:[%s2041 + $0x58] sm:$0xff]
    %v2054 = vld [vmem:[%s2041 + $0x60] sm:$0xff]
    %v2055 = vld [vmem:[%s2041 + $0x68] sm:$0xff]
    %v2056 = vld [vmem:[%s2041 + $0x70] sm:$0xff]
    %v2057 = vld [vmem:[%s2041 + $0x78] sm:$0xff]
    %v2059 = vsel %vm457, %v2042, 0
    %v2062 = vsel %vm457, %v2043, 0
    %v2065 = vsel %vm457, %v2044, 0
    %v2068 = vsel %vm457, %v2045, 0
    %v2071 = vsel %vm457, %v2046, 0
    %v2074 = vsel %vm457, %v2047, 0
    %v2077 = vsel %vm457, %v2048, 0
    %v2080 = vsel %vm457, %v2049, 0
    %v2083 = vsel %vm457, %v2050, 0
    %v2086 = vsel %vm457, %v2051, 0
    %v2089 = vsel %vm457, %v2052, 0
    %v2092 = vsel %vm457, %v2053, 0
    %v2095 = vsel %vm457, %v2054, 0
    %v2098 = vsel %vm457, %v2055, 0
    %v2101 = vsel %vm457, %v2056, 0
    %v2104 = vsel %vm457, %v2057, 0
    %2106 = vmatpush.msra.mxu0 0.0
    %2107 = vmatpush.msra.mxu0 0.0
    %2108 = vmatpush.msra.mxu0 0.0
    %2109 = vmatpush.msra.mxu0 0.0
    %2110 = vmatpush.msra.mxu0 0.0
    %2111 = vmatpush.msra.mxu0 0.0
    %2112 = vmatpush.msra.mxu0 0.0
    %2113 = vmatpush.msra.mxu0 0.0
    %2114 = vmatpush.msra.mxu0 0.0
    %2115 = vmatpush.msra.mxu0 0.0
    %2116 = vmatpush.msra.mxu0 0.0
    %2117 = vmatpush.msra.mxu0 0.0
    %2118 = vmatpush.msra.mxu0 %v1886
    %2119 = vmatpush.msra.mxu0 %v1885
    %2120 = vmatpush.msra.mxu0 %v1884
    %2121 = vmatpush.msra.mxu0 %v1883
    %2122 = vmatmul.f32.gmra.mxu0 %v2059
    %v2123 = vpop.f32.mrf.mxu0
    %v2124 = vadd.f32 0.0, %v2123
    %2125 = vmatmul.f32.gmra.mxu0 %v2062
    %v2126 = vpop.f32.mrf.mxu0
    %v2127 = vadd.f32 0.0, %v2126
    %2128 = vmatmul.f32.gmra.mxu0 %v2065
    %v2129 = vpop.f32.mrf.mxu0
    %v2130 = vadd.f32 0.0, %v2129
    %2131 = vmatmul.f32.gmra.mxu0 %v2068
    %v2132 = vpop.f32.mrf.mxu0
    %v2133 = vadd.f32 0.0, %v2132
    %2134 = vmatmul.f32.gmra.mxu0 %v2071
    %v2135 = vpop.f32.mrf.mxu0
    %v2136 = vadd.f32 0.0, %v2135
    %2137 = vmatmul.f32.gmra.mxu0 %v2074
    %v2138 = vpop.f32.mrf.mxu0
    %v2139 = vadd.f32 0.0, %v2138
    %2140 = vmatmul.f32.gmra.mxu0 %v2077
    %v2141 = vpop.f32.mrf.mxu0
    %v2142 = vadd.f32 0.0, %v2141
    %2143 = vmatmul.f32.gmra.mxu0 %v2080
    %v2144 = vpop.f32.mrf.mxu0
    %v2145 = vadd.f32 0.0, %v2144
    %2146 = vmatmul.f32.gmra.mxu0 %v2083
    %v2147 = vpop.f32.mrf.mxu0
    %v2148 = vadd.f32 0.0, %v2147
    %2149 = vmatmul.f32.gmra.mxu0 %v2086
    %v2150 = vpop.f32.mrf.mxu0
    %v2151 = vadd.f32 0.0, %v2150
    %2152 = vmatmul.f32.gmra.mxu0 %v2089
    %v2153 = vpop.f32.mrf.mxu0
    %v2154 = vadd.f32 0.0, %v2153
    %2155 = vmatmul.f32.gmra.mxu0 %v2092
    %v2156 = vpop.f32.mrf.mxu0
    %v2157 = vadd.f32 0.0, %v2156
    %2158 = vmatmul.f32.gmra.mxu0 %v2095
    %v2159 = vpop.f32.mrf.mxu0
    %v2160 = vadd.f32 0.0, %v2159
    %2161 = vmatmul.f32.gmra.mxu0 %v2098
    %v2162 = vpop.f32.mrf.mxu0
    %v2163 = vadd.f32 0.0, %v2162
    %2164 = vmatmul.f32.gmra.mxu0 %v2101
    %v2165 = vpop.f32.mrf.mxu0
    %v2166 = vadd.f32 0.0, %v2165
    %2167 = vmatmul.f32.gmra.mxu0 %v2104
    %v2168 = vpop.f32.mrf.mxu0
    %v2169 = vadd.f32 0.0, %v2168
    %2170 = vdwg.mxu0
    %v2172 = vsel %vm457, %v2025, 0
    %v2175 = vsel %vm457, %v2026, 0
    %v2178 = vsel %vm457, %v2027, 0
    %v2181 = vsel %vm457, %v2028, 0
    %v2184 = vsel %vm457, %v2029, 0
    %v2187 = vsel %vm457, %v2030, 0
    %v2190 = vsel %vm457, %v2031, 0
    %v2193 = vsel %vm457, %v2032, 0
    %v2196 = vsel %vm457, %v2033, 0
    %v2199 = vsel %vm457, %v2034, 0
    %v2202 = vsel %vm457, %v2035, 0
    %v2205 = vsel %vm457, %v2036, 0
    %v2208 = vsel %vm457, %v2037, 0
    %v2211 = vsel %vm457, %v2038, 0
    %v2214 = vsel %vm457, %v2039, 0
    %v2217 = vsel %vm457, %v2040, 0
    %2219 = vmatpush.msra.mxu0 0.0
    %2220 = vmatpush.msra.mxu0 0.0
    %2221 = vmatpush.msra.mxu0 0.0
    %2222 = vmatpush.msra.mxu0 0.0
    %2223 = vmatpush.msra.mxu0 0.0
    %2224 = vmatpush.msra.mxu0 0.0
    %2225 = vmatpush.msra.mxu0 0.0
    %2226 = vmatpush.msra.mxu0 0.0
    %2227 = vmatpush.msra.mxu0 0.0
    %2228 = vmatpush.msra.mxu0 0.0
    %2229 = vmatpush.msra.mxu0 0.0
    %2230 = vmatpush.msra.mxu0 0.0
    %2231 = vmatpush.msra.mxu0 %v2023
    %2232 = vmatpush.msra.mxu0 %v2022
    %2233 = vmatpush.msra.mxu0 %v2021
    %2234 = vmatpush.msra.mxu0 %v2020
    %2235 = vmatmul.f32.gmra.mxu0 %v2172
    %v2236 = vpop.f32.mrf.mxu0
    %v2237 = vadd.f32 %v2124, %v2236
    %2238 = vmatmul.f32.gmra.mxu0 %v2175
    %v2239 = vpop.f32.mrf.mxu0
    %v2240 = vadd.f32 %v2127, %v2239
    %2241 = vmatmul.f32.gmra.mxu0 %v2178
    %v2242 = vpop.f32.mrf.mxu0
    %v2243 = vadd.f32 %v2130, %v2242
    %2244 = vmatmul.f32.gmra.mxu0 %v2181
    %v2245 = vpop.f32.mrf.mxu0
    %v2246 = vadd.f32 %v2133, %v2245
    %2247 = vmatmul.f32.gmra.mxu0 %v2184
    %v2248 = vpop.f32.mrf.mxu0
    %v2249 = vadd.f32 %v2136, %v2248
    %2250 = vmatmul.f32.gmra.mxu0 %v2187
    %v2251 = vpop.f32.mrf.mxu0
    %v2252 = vadd.f32 %v2139, %v2251
    %2253 = vmatmul.f32.gmra.mxu0 %v2190
    %v2254 = vpop.f32.mrf.mxu0
    %v2255 = vadd.f32 %v2142, %v2254
    %2256 = vmatmul.f32.gmra.mxu0 %v2193
    %v2257 = vpop.f32.mrf.mxu0
    %v2258 = vadd.f32 %v2145, %v2257
    %2259 = vmatmul.f32.gmra.mxu0 %v2196
    %v2260 = vpop.f32.mrf.mxu0
    %v2261 = vadd.f32 %v2148, %v2260
    %2262 = vmatmul.f32.gmra.mxu0 %v2199
    %v2263 = vpop.f32.mrf.mxu0
    %v2264 = vadd.f32 %v2151, %v2263
    %2265 = vmatmul.f32.gmra.mxu0 %v2202
    %v2266 = vpop.f32.mrf.mxu0
    %v2267 = vadd.f32 %v2154, %v2266
    %2268 = vmatmul.f32.gmra.mxu0 %v2205
    %v2269 = vpop.f32.mrf.mxu0
    %v2270 = vadd.f32 %v2157, %v2269
    %2271 = vmatmul.f32.gmra.mxu0 %v2208
    %v2272 = vpop.f32.mrf.mxu0
    %v2273 = vadd.f32 %v2160, %v2272
    %2274 = vmatmul.f32.gmra.mxu0 %v2211
    %v2275 = vpop.f32.mrf.mxu0
    %v2276 = vadd.f32 %v2163, %v2275
    %2277 = vmatmul.f32.gmra.mxu0 %v2214
    %v2278 = vpop.f32.mrf.mxu0
    %v2279 = vadd.f32 %v2166, %v2278
    %2280 = vmatmul.f32.gmra.mxu0 %v2217
    %v2281 = vpop.f32.mrf.mxu0
    %v2282 = vadd.f32 %v2169, %v2281
    %2283 = vdwg.mxu0
    %s2284 = scalar_lea.vmem %s6, 256
    %v2285 = vld [vmem:[%s2284] sm:$0xff]
    %v2286 = vld [vmem:[%s2284 + $0x8] sm:$0xff]
    %v2287 = vld [vmem:[%s2284 + $0x10] sm:$0xff]
    %v2288 = vld [vmem:[%s2284 + $0x18] sm:$0xff]
    %v2289 = vld [vmem:[%s2284 + $0x20] sm:$0xff]
    %v2290 = vld [vmem:[%s2284 + $0x28] sm:$0xff]
    %v2291 = vld [vmem:[%s2284 + $0x30] sm:$0xff]
    %v2292 = vld [vmem:[%s2284 + $0x38] sm:$0xff]
    %v2293 = vld [vmem:[%s2284 + $0x40] sm:$0xff]
    %v2294 = vld [vmem:[%s2284 + $0x48] sm:$0xff]
    %v2295 = vld [vmem:[%s2284 + $0x50] sm:$0xff]
    %v2296 = vld [vmem:[%s2284 + $0x58] sm:$0xff]
    %v2297 = vld [vmem:[%s2284 + $0x60] sm:$0xff]
    %v2298 = vld [vmem:[%s2284 + $0x68] sm:$0xff]
    %v2299 = vld [vmem:[%s2284 + $0x70] sm:$0xff]
    %v2300 = vld [vmem:[%s2284 + $0x78] sm:$0xff]
    %2302 = vset.pattern.permute.xlu0 0
    %2303 = vperm.xlu0 %2302, %v2285
    %v2304 = vpop.permute.xlu0 %2303
    %2307 = vset.pattern.permute.xlu0 0
    %2308 = vperm.xlu0 %2307, %v2286
    %v2309 = vpop.permute.xlu0 %2308
    %2312 = vset.pattern.permute.xlu0 0
    %2313 = vperm.xlu0 %2312, %v2287
    %v2314 = vpop.permute.xlu0 %2313
    %2317 = vset.pattern.permute.xlu0 0
    %2318 = vperm.xlu0 %2317, %v2288
    %v2319 = vpop.permute.xlu0 %2318
    %2322 = vset.pattern.permute.xlu0 0
    %2323 = vperm.xlu0 %2322, %v2289
    %v2324 = vpop.permute.xlu0 %2323
    %2327 = vset.pattern.permute.xlu0 0
    %2328 = vperm.xlu0 %2327, %v2290
    %v2329 = vpop.permute.xlu0 %2328
    %2332 = vset.pattern.permute.xlu0 0
    %2333 = vperm.xlu0 %2332, %v2291
    %v2334 = vpop.permute.xlu0 %2333
    %2337 = vset.pattern.permute.xlu0 0
    %2338 = vperm.xlu0 %2337, %v2292
    %v2339 = vpop.permute.xlu0 %2338
    %2342 = vset.pattern.permute.xlu0 0
    %2343 = vperm.xlu0 %2342, %v2293
    %v2344 = vpop.permute.xlu0 %2343
    %2347 = vset.pattern.permute.xlu0 0
    %2348 = vperm.xlu0 %2347, %v2294
    %v2349 = vpop.permute.xlu0 %2348
    %2352 = vset.pattern.permute.xlu0 0
    %2353 = vperm.xlu0 %2352, %v2295
    %v2354 = vpop.permute.xlu0 %2353
    %2357 = vset.pattern.permute.xlu0 0
    %2358 = vperm.xlu0 %2357, %v2296
    %v2359 = vpop.permute.xlu0 %2358
    %2362 = vset.pattern.permute.xlu0 0
    %2363 = vperm.xlu0 %2362, %v2297
    %v2364 = vpop.permute.xlu0 %2363
    %2367 = vset.pattern.permute.xlu0 0
    %2368 = vperm.xlu0 %2367, %v2298
    %v2369 = vpop.permute.xlu0 %2368
    %2372 = vset.pattern.permute.xlu0 0
    %2373 = vperm.xlu0 %2372, %v2299
    %v2374 = vpop.permute.xlu0 %2373
    %2377 = vset.pattern.permute.xlu0 0
    %2378 = vperm.xlu0 %2377, %v2300
    %v2379 = vpop.permute.xlu0 %2378
    %v2381 = vadd.f32 %v2237, %v2304
    %v2382 = vadd.f32 %v2240, %v2309
    %v2383 = vadd.f32 %v2243, %v2314
    %v2384 = vadd.f32 %v2246, %v2319
    %v2385 = vadd.f32 %v2249, %v2324
    %v2386 = vadd.f32 %v2252, %v2329
    %v2387 = vadd.f32 %v2255, %v2334
    %v2388 = vadd.f32 %v2258, %v2339
    %v2389 = vadd.f32 %v2261, %v2344
    %v2390 = vadd.f32 %v2264, %v2349
    %v2391 = vadd.f32 %v2267, %v2354
    %v2392 = vadd.f32 %v2270, %v2359
    %v2393 = vadd.f32 %v2273, %v2364
    %v2394 = vadd.f32 %v2276, %v2369
    %v2395 = vadd.f32 %v2279, %v2374
    %v2396 = vadd.f32 %v2282, %v2379
    %v2397 = vxor.u32 %v2381, 2147483648
    %v2398 = vxor.u32 %v2382, 2147483648
    %v2399 = vxor.u32 %v2383, 2147483648
    %v2400 = vxor.u32 %v2384, 2147483648
    %v2401 = vxor.u32 %v2385, 2147483648
    %v2402 = vxor.u32 %v2386, 2147483648
    %v2403 = vxor.u32 %v2387, 2147483648
    %v2404 = vxor.u32 %v2388, 2147483648
    %v2405 = vxor.u32 %v2389, 2147483648
    %v2406 = vxor.u32 %v2390, 2147483648
    %v2407 = vxor.u32 %v2391, 2147483648
    %v2408 = vxor.u32 %v2392, 2147483648
    %v2409 = vmul.f32 %v2397, 1.442695
    %v2410 = vpow.pop %v2409
    %v2411 = vmul.f32 %v2398, 1.442695
    %v2412 = vpow.pop %v2411
    %v2413 = vmul.f32 %v2399, 1.442695
    %v2414 = vpow.pop %v2413
    %v2415 = vmul.f32 %v2400, 1.442695
    %v2416 = vpow.pop %v2415
    %v2417 = vmul.f32 %v2401, 1.442695
    %v2418 = vpow.pop %v2417
    %v2419 = vmul.f32 %v2402, 1.442695
    %v2420 = vpow.pop %v2419
    %v2421 = vmul.f32 %v2403, 1.442695
    %v2422 = vpow.pop %v2421
    %v2423 = vmul.f32 %v2404, 1.442695
    %v2424 = vpow.pop %v2423
    %v2425 = vmul.f32 %v2405, 1.442695
    %v2426 = vpow.pop %v2425
    %v2427 = vmul.f32 %v2406, 1.442695
    %v2428 = vpow.pop %v2427
    %v2429 = vmul.f32 %v2407, 1.442695
    %v2430 = vpow.pop %v2429
    %v2431 = vmul.f32 %v2408, 1.442695
    %v2432 = vpow.pop %v2431
    %v2433 = vadd.f32 %v2410, 1.0
    %v2434 = vadd.f32 %v2412, 1.0
    %v2435 = vadd.f32 %v2414, 1.0
    %v2436 = vadd.f32 %v2416, 1.0
    %v2437 = vadd.f32 %v2418, 1.0
    %v2438 = vadd.f32 %v2420, 1.0
    %v2439 = vadd.f32 %v2422, 1.0
    %v2440 = vadd.f32 %v2424, 1.0
    %v2441 = vadd.f32 %v2426, 1.0
    %v2442 = vadd.f32 %v2428, 1.0
    %v2443 = vadd.f32 %v2430, 1.0
    %v2444 = vadd.f32 %v2432, 1.0
    %v2445 = vrcp.pop %v2433
    %v2446 = vmul.f32 %v2433, %v2445
    %v2447 = vsub.f32 1.0, %v2446
    %v2448 = vmul.f32 %v2445, %v2447
    %v2449 = vadd.f32 %v2445, %v2448
    %vm2450 = vweird.f32 %v2433
    %vm2451 = vweird.f32 %v2445
    %vm2452 = vmor %vm2450, %vm2451
    %v2453 = vsel %vm2452, %v2445, %v2449
    %v2454 = vand.u32 2147483647, %v2433
    %vm2455 = vcmp.eq.f32.partialorder %v2454, 8.507059e+37
    %v2456 = vand.u32 %v2433, 2147483648
    %v2457 = vor.u32 1.1754944e-38, %v2456
    %v2458 = vsel %vm2455, %v2457, %v2453
    %v2459 = vmul.f32 1.0, %v2458
    %v2460 = vrcp.pop %v2434
    %v2461 = vmul.f32 %v2434, %v2460
    %v2462 = vsub.f32 1.0, %v2461
    %v2463 = vmul.f32 %v2460, %v2462
    %v2464 = vadd.f32 %v2460, %v2463
    %vm2465 = vweird.f32 %v2434
    %vm2466 = vweird.f32 %v2460
    %vm2467 = vmor %vm2465, %vm2466
    %v2468 = vsel %vm2467, %v2460, %v2464
    %v2469 = vand.u32 2147483647, %v2434
    %vm2470 = vcmp.eq.f32.partialorder %v2469, 8.507059e+37
    %v2471 = vand.u32 %v2434, 2147483648
    %v2472 = vor.u32 1.1754944e-38, %v2471
    %v2473 = vsel %vm2470, %v2472, %v2468
    %v2474 = vmul.f32 1.0, %v2473
    %v2475 = vrcp.pop %v2435
    %v2476 = vmul.f32 %v2435, %v2475
    %v2477 = vsub.f32 1.0, %v2476
    %v2478 = vmul.f32 %v2475, %v2477
    %v2479 = vadd.f32 %v2475, %v2478
    %vm2480 = vweird.f32 %v2435
    %vm2481 = vweird.f32 %v2475
    %vm2482 = vmor %vm2480, %vm2481
    %v2483 = vsel %vm2482, %v2475, %v2479
    %v2484 = vand.u32 2147483647, %v2435
    %vm2485 = vcmp.eq.f32.partialorder %v2484, 8.507059e+37
    %v2486 = vand.u32 %v2435, 2147483648
    %v2487 = vor.u32 1.1754944e-38, %v2486
    %v2488 = vsel %vm2485, %v2487, %v2483
    %v2489 = vmul.f32 1.0, %v2488
    %v2490 = vrcp.pop %v2436
    %v2491 = vmul.f32 %v2436, %v2490
    %v2492 = vsub.f32 1.0, %v2491
    %v2493 = vmul.f32 %v2490, %v2492
    %v2494 = vadd.f32 %v2490, %v2493
    %vm2495 = vweird.f32 %v2436
    %vm2496 = vweird.f32 %v2490
    %vm2497 = vmor %vm2495, %vm2496
    %v2498 = vsel %vm2497, %v2490, %v2494
    %v2499 = vand.u32 2147483647, %v2436
    %vm2500 = vcmp.eq.f32.partialorder %v2499, 8.507059e+37
    %v2501 = vand.u32 %v2436, 2147483648
    %v2502 = vor.u32 1.1754944e-38, %v2501
    %v2503 = vsel %vm2500, %v2502, %v2498
    %v2504 = vmul.f32 1.0, %v2503
    %v2505 = vrcp.pop %v2437
    %v2506 = vmul.f32 %v2437, %v2505
    %v2507 = vsub.f32 1.0, %v2506
    %v2508 = vmul.f32 %v2505, %v2507
    %v2509 = vadd.f32 %v2505, %v2508
    %vm2510 = vweird.f32 %v2437
    %vm2511 = vweird.f32 %v2505
    %vm2512 = vmor %vm2510, %vm2511
    %v2513 = vsel %vm2512, %v2505, %v2509
    %v2514 = vand.u32 2147483647, %v2437
    %vm2515 = vcmp.eq.f32.partialorder %v2514, 8.507059e+37
    %v2516 = vand.u32 %v2437, 2147483648
    %v2517 = vor.u32 1.1754944e-38, %v2516
    %v2518 = vsel %vm2515, %v2517, %v2513
    %v2519 = vmul.f32 1.0, %v2518
    %v2520 = vrcp.pop %v2438
    %v2521 = vmul.f32 %v2438, %v2520
    %v2522 = vsub.f32 1.0, %v2521
    %v2523 = vmul.f32 %v2520, %v2522
    %v2524 = vadd.f32 %v2520, %v2523
    %vm2525 = vweird.f32 %v2438
    %vm2526 = vweird.f32 %v2520
    %vm2527 = vmor %vm2525, %vm2526
    %v2528 = vsel %vm2527, %v2520, %v2524
    %v2529 = vand.u32 2147483647, %v2438
    %vm2530 = vcmp.eq.f32.partialorder %v2529, 8.507059e+37
    %v2531 = vand.u32 %v2438, 2147483648
    %v2532 = vor.u32 1.1754944e-38, %v2531
    %v2533 = vsel %vm2530, %v2532, %v2528
    %v2534 = vmul.f32 1.0, %v2533
    %v2535 = vrcp.pop %v2439
    %v2536 = vmul.f32 %v2439, %v2535
    %v2537 = vsub.f32 1.0, %v2536
    %v2538 = vmul.f32 %v2535, %v2537
    %v2539 = vadd.f32 %v2535, %v2538
    %vm2540 = vweird.f32 %v2439
    %vm2541 = vweird.f32 %v2535
    %vm2542 = vmor %vm2540, %vm2541
    %v2543 = vsel %vm2542, %v2535, %v2539
    %v2544 = vand.u32 2147483647, %v2439
    %vm2545 = vcmp.eq.f32.partialorder %v2544, 8.507059e+37
    %v2546 = vand.u32 %v2439, 2147483648
    %v2547 = vor.u32 1.1754944e-38, %v2546
    %v2548 = vsel %vm2545, %v2547, %v2543
    %v2549 = vmul.f32 1.0, %v2548
    %v2550 = vrcp.pop %v2440
    %v2551 = vmul.f32 %v2440, %v2550
    %v2552 = vsub.f32 1.0, %v2551
    %v2553 = vmul.f32 %v2550, %v2552
    %v2554 = vadd.f32 %v2550, %v2553
    %vm2555 = vweird.f32 %v2440
    %vm2556 = vweird.f32 %v2550
    %vm2557 = vmor %vm2555, %vm2556
    %v2558 = vsel %vm2557, %v2550, %v2554
    %v2559 = vand.u32 2147483647, %v2440
    %vm2560 = vcmp.eq.f32.partialorder %v2559, 8.507059e+37
    %v2561 = vand.u32 %v2440, 2147483648
    %v2562 = vor.u32 1.1754944e-38, %v2561
    %v2563 = vsel %vm2560, %v2562, %v2558
    %v2564 = vmul.f32 1.0, %v2563
    %v2565 = vrcp.pop %v2441
    %v2566 = vmul.f32 %v2441, %v2565
    %v2567 = vsub.f32 1.0, %v2566
    %v2568 = vmul.f32 %v2565, %v2567
    %v2569 = vadd.f32 %v2565, %v2568
    %vm2570 = vweird.f32 %v2441
    %vm2571 = vweird.f32 %v2565
    %vm2572 = vmor %vm2570, %vm2571
    %v2573 = vsel %vm2572, %v2565, %v2569
    %v2574 = vand.u32 2147483647, %v2441
    %vm2575 = vcmp.eq.f32.partialorder %v2574, 8.507059e+37
    %v2576 = vand.u32 %v2441, 2147483648
    %v2577 = vor.u32 1.1754944e-38, %v2576
    %v2578 = vsel %vm2575, %v2577, %v2573
    %v2579 = vmul.f32 1.0, %v2578
    %v2580 = vrcp.pop %v2442
    %v2581 = vmul.f32 %v2442, %v2580
    %v2582 = vsub.f32 1.0, %v2581
    %v2583 = vmul.f32 %v2580, %v2582
    %v2584 = vadd.f32 %v2580, %v2583
    %vm2585 = vweird.f32 %v2442
    %vm2586 = vweird.f32 %v2580
    %vm2587 = vmor %vm2585, %vm2586
    %v2588 = vsel %vm2587, %v2580, %v2584
    %v2589 = vand.u32 2147483647, %v2442
    %vm2590 = vcmp.eq.f32.partialorder %v2589, 8.507059e+37
    %v2591 = vand.u32 %v2442, 2147483648
    %v2592 = vor.u32 1.1754944e-38, %v2591
    %v2593 = vsel %vm2590, %v2592, %v2588
    %v2594 = vmul.f32 1.0, %v2593
    %v2595 = vrcp.pop %v2443
    %v2596 = vmul.f32 %v2443, %v2595
    %v2597 = vsub.f32 1.0, %v2596
    %v2598 = vmul.f32 %v2595, %v2597
    %v2599 = vadd.f32 %v2595, %v2598
    %vm2600 = vweird.f32 %v2443
    %vm2601 = vweird.f32 %v2595
    %vm2602 = vmor %vm2600, %vm2601
    %v2603 = vsel %vm2602, %v2595, %v2599
    %v2604 = vand.u32 2147483647, %v2443
    %vm2605 = vcmp.eq.f32.partialorder %v2604, 8.507059e+37
    %v2606 = vand.u32 %v2443, 2147483648
    %v2607 = vor.u32 1.1754944e-38, %v2606
    %v2608 = vsel %vm2605, %v2607, %v2603
    %v2609 = vmul.f32 1.0, %v2608
    %v2610 = vrcp.pop %v2444
    %v2611 = vmul.f32 %v2444, %v2610
    %v2612 = vsub.f32 1.0, %v2611
    %v2613 = vmul.f32 %v2610, %v2612
    %v2614 = vadd.f32 %v2610, %v2613
    %vm2615 = vweird.f32 %v2444
    %vm2616 = vweird.f32 %v2610
    %vm2617 = vmor %vm2615, %vm2616
    %v2618 = vsel %vm2617, %v2610, %v2614
    %v2619 = vand.u32 2147483647, %v2444
    %vm2620 = vcmp.eq.f32.partialorder %v2619, 8.507059e+37
    %v2621 = vand.u32 %v2444, 2147483648
    %v2622 = vor.u32 1.1754944e-38, %v2621
    %v2623 = vsel %vm2620, %v2622, %v2618
    %v2624 = vmul.f32 1.0, %v2623
    %v2625 = vtanh.pop %v2393
    %v2626 = vtanh.pop %v2394
    %v2627 = vtanh.pop %v2395
    %v2628 = vtanh.pop %v2396
    %v2629 = vmul.f32 %v2519, %v1875
    %v2630 = vmul.f32 %v2534, %v1876
    %v2631 = vmul.f32 %v2549, %v1877
    %v2632 = vmul.f32 %v2564, %v1878
    %v2633 = vmul.f32 %v2459, %v2625
    %v2634 = vmul.f32 %v2474, %v2626
    %v2635 = vmul.f32 %v2489, %v2627
    %v2636 = vmul.f32 %v2504, %v2628
    %v2637 = vadd.f32 %v2629, %v2633
    %v2638 = vadd.f32 %v2630, %v2634
    %v2639 = vadd.f32 %v2631, %v2635
    %v2640 = vadd.f32 %v2632, %v2636
    %v2641 = vtanh.pop %v2637
    %v2642 = vtanh.pop %v2638
    %v2643 = vtanh.pop %v2639
    %v2644 = vtanh.pop %v2640
    %v2645 = vmul.f32 %v2579, %v2641
    %v2646 = vmul.f32 %v2594, %v2642
    %v2647 = vmul.f32 %v2609, %v2643
    %v2648 = vmul.f32 %v2624, %v2644
    %v2649 = vmul.f32 %v2645, %v1128
    %v2650 = vmul.f32 %v2646, %v1133
    %v2651 = vmul.f32 %v2647, %v1138
    %v2652 = vmul.f32 %v2648, %v1143
    %v2653 = vadd.f32 %v2649, %v2650
    %v2654 = vadd.f32 %v2653, %v2651
    %v2655 = vadd.f32 %v2654, %v2652
    %v2656 = vrot.slane %v2655, 4
    %v2657 = vadd.f32 %v2655, %v2656
    %v2658 = vrot.slane %v2657, 2
    %v2659 = vadd.f32 %v2657, %v2658
    %v2660 = vrot.slane %v2659, 1
    %v2661 = vadd.f32 %v2659, %v2660
    %v2662 = vmax.f32 %v1900, %v2661
    %v2663 = vsub.f32 %v1900, %v2662
    %v2664 = vmul.f32 %v2663, 1.442695
    %v2665 = vpow.pop %v2664
    %v2666 = vsub.f32 %v2661, %v2662
    %v2667 = vmul.f32 %v2666, 1.442695
    %v2668 = vpow.pop %v2667
    %v2669 = vmul.f32 %v1907, %v2665
    %v2670 = vadd.f32 %v2669, %v2668
    %v2671 = vmul.f32 %v1916, %v2665
    %v2672 = vmul.f32 %v1917, %v2665
    %v2673 = vmul.f32 %v1918, %v2665
    %v2674 = vmul.f32 %v1919, %v2665
    %v2675 = vmul.f32 %v2668, %v2645
    %v2676 = vmul.f32 %v2668, %v2646
    %v2677 = vmul.f32 %v2668, %v2647
    %v2678 = vmul.f32 %v2668, %v2648
    %v2679 = vadd.f32 %v2671, %v2675
    %v2680 = vadd.f32 %v2672, %v2676
    %v2681 = vadd.f32 %v2673, %v2677
    %v2682 = vadd.f32 %v2674, %v2678
    %v2683 = vrcp.pop %v2670
    %v2684 = vmul.f32 %v2679, %v2683
    %v2685 = vmul.f32 %v2680, %v2683
    %v2686 = vmul.f32 %v2681, %v2683
    %v2687 = vmul.f32 %v2682, %v2683
    %2688 = vst [vmem:[#allocation2] sm:$0xff] %v2684
    %2689 = vst [vmem:[#allocation2 + $0x8] sm:$0xff] %v2685
    %2690 = vst [vmem:[#allocation2 + $0x10] sm:$0xff] %v2686
    %2691 = vst [vmem:[#allocation2 + $0x18] sm:$0xff] %v2687
    // Predicated region
    $region42: #{tpu_custom_call.1} parent=1 // pred_check
      _
    $region43: #{tpu_custom_call.1} parent=1 // pred_check_branch
      %2693 = sbr.rel (0) target = $region45
    $region44: #{tpu_custom_call.1} parent=1 // pred_region
      %2695 = vsyncadd [#allocation3], 0
      %s2696 = sshll.u32 [#allocation2], 4
      %s2697 = int_to_ptr.vmem [resolvable:$true] %s2696
      %s2698 = sshll.u32 %s10, 4
      %s2699 = int_to_ptr.hbm [resolvable:$true] %s2698
      %2704 = dma.vmem_to_hbm [thread:$0]  %s2697, 512, %s2699, [#allocation3], 128, 128, 8
    $region45: #{tpu_custom_call.1} parent=1 // pred_fallthru
      _
    // Predicated region
    $region46: #{tpu_custom_call.1} parent=1 // pred_check
      _
    $region47: #{tpu_custom_call.1} parent=1 // pred_check_branch
      %2706 = sbr.rel (0) target = $region49
    $region48: #{tpu_custom_call.1} parent=1 // pred_region
      %2708 = dma.done [#allocation3], 512
    $region49: #{tpu_custom_call.1} parent=1 // pred_fallthru
      _
    %2709 = vsyncpa [#allocation3], 1

</llo_original>
